<compile_context>
chip_gen: v5e
topology: v5e:2x2
jax: 0.10.0
libtpu: 0.0.40
codegen_flags: <defaults>
</compile_context>

<pallas_src>
import math

import jax
import jax.numpy as jnp
import numpy as np
from jax.experimental import pallas as pl
from jax.experimental.pallas import tpu as pltpu

LMBDA = 100.0
_LOG2PI = math.log(2.0 * math.pi)


def bnpe_tile_kernel(theta_ref, thetap_ref, x_ref, w1_ref, wh_ref, b_ref,
                     out_ref):
    """One batch tile.  Inputs arrive row-major (batch on sublanes); all heavy
    compute runs lane-dense (batch on the 128-lane axis)."""
    th = theta_ref[...]            # (bt, D)   row-major
    tp = thetap_ref[...]           # (bt, D)   row-major
    xb = x_ref[...]                # (bt, Dx)  row-major

    H = w1_ref.shape[0]
    D = th.shape[1]

    b1 = b_ref[0:H, :]             # (H, 1)   packed biases, static slices
    bh = b_ref[H:H + 2 * D, :]     # (2D, 1)  = [bm ; bs]

    nt = (((1,), (1,)), ((), ()))  # contract last dims of both operands (NT)

    # hidden layer, lane-dense: hT = tanh(W1^T @ x^T + b1).  The x transpose is
    # folded into the MXU pass by contracting the last dims of both operands.
    hT = jnp.tanh(
        jax.lax.dot_general(w1_ref[...], xb, nt,
                            preferred_element_type=jnp.float32) + b1)  # (H, bt)

    # fused heads: (2D, H) @ (H, bt) -> [mu ; log_sigma], lane-dense
    head = jnp.dot(wh_ref[...], hT, preferred_element_type=jnp.float32) + bh
    mu = head[0:D, :]              # (D, bt)
    log_sigma = head[D:2 * D, :]   # (D, bt)
    inv_sigma = jnp.exp(-log_sigma)

    # Relayout theta / theta_prime to (D, bt) with a tiny identity matmul:
    # tt[d, b] = sum_k eye[d, k] * theta[b, k].  Guaranteed MXU lowering and
    # numerically exact; the MXU has huge slack at these shapes.
    rows = jax.lax.broadcasted_iota(jnp.int32, (D, D), 0)
    cols = jax.lax.broadcasted_iota(jnp.int32, (D, D), 1)
    eye = jnp.where(rows == cols, 1.0, 0.0).astype(jnp.float32)
    tt = jax.lax.dot_general(eye, th, nt,
                             preferred_element_type=jnp.float32)      # (D, bt)
    tpt = jax.lax.dot_general(eye, tp, nt,
                              preferred_element_type=jnp.float32)     # (D, bt)

    # a(t)     = sum_d(-0.5 z_d^2 - log_sigma_d)              (sublane reduce)
    # log_p(t) = a(t) - 0.5*D*log(2*pi)
    # delta(t) = log_p(t) - prior_logp(t) = a(t) + 0.5*sum_d t_d^2
    z = (tt - mu) * inv_sigma
    a = jnp.sum(-0.5 * z * z - log_sigma, axis=0, keepdims=True)      # (1, bt)
    sq = jnp.sum(tt * tt, axis=0, keepdims=True)                      # (1, bt)
    log_p = a - 0.5 * D * _LOG2PI
    delta = a + 0.5 * sq

    zp = (tpt - mu) * inv_sigma
    ap = jnp.sum(-0.5 * zp * zp - log_sigma, axis=0, keepdims=True)
    sqp = jnp.sum(tpt * tpt, axis=0, keepdims=True)
    delta_p = ap + 0.5 * sqp

    # Single merged (2, bt) lane-dense output block: row 0 = log_p, row 1 = s.
    out_ref[0:1, :] = log_p
    out_ref[1:2, :] = jax.nn.sigmoid(delta) + jax.nn.sigmoid(delta_p) - 1.0


def bnpe_loss(theta, x, params, *, lmbda=LMBDA, bt=512):
    w1, b1, wm, bm, ws, bs = params
    B, D = theta.shape
    Dx = x.shape[1]
    H = w1.shape[1]

    # Static sublane slices / BlockSpecs assume these (review robustness note).
    assert D % 8 == 0 and H % 8 == 0, "pad D/H to multiples of 8"

    # The batch roll must see the FULL batch (it couples adjacent rows across
    # tile boundaries with a grid >= 2), so it stays as the single wrapper op.
    theta_prime = jnp.roll(theta, 1, axis=0)

    # Tiny weight repacking (a few KiB): weights as (out, in), biases packed.
    w1_t = w1.T                                        # (H,  Dx)
    wh = jnp.concatenate([wm, ws], axis=1).T           # (2D, H)
    bias = jnp.concatenate([b1, bm, bs], axis=1).T     # (H + 2D, 1)

    bt = max(8, min(bt, B))
    num_tiles = pl.cdiv(B, bt)      # B=1024, bt=512 -> 2 tiles (v7x dual-TC)

    flops = 2 * B * (H * Dx + 2 * D * H + 2 * D * D)
    bytes_accessed = 4 * (B * (2 * D + Dx) + 2 * B
                          + H * Dx + 2 * D * H + (H + 2 * D))

    out = pl.pallas_call(
        bnpe_tile_kernel,
        out_shape=jax.ShapeDtypeStruct((2, B), jnp.float32),
        grid_spec=pltpu.PrefetchScalarGridSpec(
            num_scalar_prefetch=0,
            grid=(num_tiles,),
            in_specs=[
                pl.BlockSpec((bt, D), lambda i: (i, 0)),           # theta
                pl.BlockSpec((bt, D), lambda i: (i, 0)),           # theta_prime
                pl.BlockSpec((bt, Dx), lambda i: (i, 0)),          # x
                pl.BlockSpec((H, Dx), lambda i: (0, 0)),           # W1^T (resident)
                pl.BlockSpec((2 * D, H), lambda i: (0, 0)),        # [Wm;Ws]^T
                pl.BlockSpec((H + 2 * D, 1), lambda i: (0, 0)),    # packed biases
            ],
            out_specs=pl.BlockSpec((2, bt), lambda i: (0, i)),     # [log_p ; s]
        ),
        compiler_params=pltpu.CompilerParams(
            dimension_semantics=("parallel",)),
        cost_estimate=pl.CostEstimate(flops=flops,
                                      transcendentals=B * (H + D + 2),
                                      bytes_accessed=bytes_accessed),
    )(theta, theta_prime, x, w1_t, wh, bias)

    # Global (true-B) means + nonlinear combine in the wrapper.
    log_p = out[0, :B]
    s = out[1, :B]
    l0 = -jnp.mean(log_p)
    lb = jnp.square(jnp.mean(s))
    return l0 + lmbda * lb


def bnpe_loss_ref(theta, x, params, *, lmbda=LMBDA):
    """Pure-JAX reference of the same semantics (for verification)."""
    w1, b1, wm, bm, ws, bs = params
    theta_prime = jnp.roll(theta, 1, axis=0)
    h = jnp.tanh(x @ w1 + b1)
    mu = h @ wm + bm
    log_sigma = h @ ws + bs

    def est_logp(t):
        z = (t - mu) * jnp.exp(-log_sigma)
        return jnp.sum(-0.5 * z * z - log_sigma - 0.5 * _LOG2PI, axis=-1)

    def prior_logp(t):
        return jnp.sum(-0.5 * t * t - 0.5 * _LOG2PI, axis=-1)

    log_p = est_logp(theta)
    log_p_prime = est_logp(theta_prime)
    l0 = -jnp.mean(log_p)
    lb = jnp.square(jnp.mean(jax.nn.sigmoid(log_p - prior_logp(theta))
                             + jax.nn.sigmoid(log_p_prime - prior_logp(theta_prime))
                             - 1.0))
    return l0 + lmbda * lb


if __name__ == "__main__":
    # 2 tiles of 512 samples -> exercises the 1-D batch grid (and dual-TC
    # sharding on v7x); feature dims match the synthetic estimator.
    B, D_THETA, D_X, H = 1024, 8, 16, 32

    key = jax.random.PRNGKey(0)
    k_theta, k_x, k_w1, k_b1, k_wm, k_bm, k_ws, k_bs = jax.random.split(key, 8)

    theta = jax.random.normal(k_theta, (B, D_THETA), dtype=jnp.float32)
    x = jax.random.normal(k_x, (B, D_X), dtype=jnp.float32)

    params = (
        jax.random.normal(k_w1, (D_X, H), dtype=jnp.float32) * 0.1,
        jax.random.normal(k_b1, (1, H), dtype=jnp.float32) * 0.1,
        jax.random.normal(k_wm, (H, D_THETA), dtype=jnp.float32) * 0.1,
        jax.random.normal(k_bm, (1, D_THETA), dtype=jnp.float32) * 0.1,
        jax.random.normal(k_ws, (H, D_THETA), dtype=jnp.float32) * 0.1,
        jax.random.normal(k_bs, (1, D_THETA), dtype=jnp.float32) * 0.1,
    )

    loss_fn = jax.jit(bnpe_loss)
    out = jax.block_until_ready(loss_fn(theta, x, params))
    ref = jax.block_until_ready(bnpe_loss_ref(theta, x, params))
    np.testing.assert_allclose(np.asarray(out), np.asarray(ref),
                               rtol=2e-4, atol=2e-4)
    print("KERNEL_OK")
</pallas_src>

<mosaic_0001>
module attributes {stable_mosaic.version = 11 : i64} {
  func.func @bnpe_tile_kernel(%arg0: i32, %arg1: memref<512x8xf32, #tpu.memory_space<vmem>>, %arg2: memref<512x8xf32, #tpu.memory_space<vmem>>, %arg3: memref<512x16xf32, #tpu.memory_space<vmem>>, %arg4: memref<32x16xf32, #tpu.memory_space<vmem>>, %arg5: memref<16x32xf32, #tpu.memory_space<vmem>>, %arg6: memref<48x1xf32, #tpu.memory_space<vmem>>, %arg7: memref<2x512xf32, #tpu.memory_space<vmem>>) attributes {dimension_semantics = [#tpu.dimension_semantics<parallel>], iteration_bounds = array<i64: 2>, scalar_prefetch = 0 : i64, scratch_operands = 0 : i64, tpu.core_type = #tpu.core_type<tc>, window_params = [{transform_indices = @transform_0, window_bounds = array<i64: 512, 8>}, {transform_indices = @transform_1, window_bounds = array<i64: 512, 8>}, {transform_indices = @transform_2, window_bounds = array<i64: 512, 16>}, {pipeline_mode = #tpu.pipeline_mode<synchronous>, transform_indices = @transform_3, window_bounds = array<i64: 32, 16>}, {pipeline_mode = #tpu.pipeline_mode<synchronous>, transform_indices = @transform_4, window_bounds = array<i64: 16, 32>}, {pipeline_mode = #tpu.pipeline_mode<synchronous>, transform_indices = @transform_5, window_bounds = array<i64: 48, 1>}, {transform_indices = @transform_6, window_bounds = array<i64: 2, 512>}]} {
    %c0 = arith.constant 0 : index
    %c0_0 = arith.constant 0 : index
    %0 = vector.load %arg1[%c0, %c0_0] : memref<512x8xf32, #tpu.memory_space<vmem>>, vector<512x8xf32>
    %c0_1 = arith.constant 0 : index
    %c0_2 = arith.constant 0 : index
    %1 = vector.load %arg2[%c0_1, %c0_2] : memref<512x8xf32, #tpu.memory_space<vmem>>, vector<512x8xf32>
    %c0_3 = arith.constant 0 : index
    %c0_4 = arith.constant 0 : index
    %2 = vector.load %arg3[%c0_3, %c0_4] : memref<512x16xf32, #tpu.memory_space<vmem>>, vector<512x16xf32>
    %c0_5 = arith.constant 0 : index
    %c0_6 = arith.constant 0 : index
    %3 = vector.load %arg6[%c0_5, %c0_6] : memref<48x1xf32, #tpu.memory_space<vmem>>, vector<32x1xf32>
    %c32 = arith.constant 32 : index
    %c0_7 = arith.constant 0 : index
    %4 = vector.load %arg6[%c32, %c0_7] : memref<48x1xf32, #tpu.memory_space<vmem>>, vector<16x1xf32>
    %c0_8 = arith.constant 0 : index
    %c0_9 = arith.constant 0 : index
    %5 = vector.load %arg4[%c0_8, %c0_9] : memref<32x16xf32, #tpu.memory_space<vmem>>, vector<32x16xf32>
    %cst = arith.constant dense<0.000000e+00> : vector<32x512xf32>
    %6 = tpu.matmul %5, %2, %cst {dimension_numbers = #tpu.dot_dimension_numbers<[1], [1], [0], [0], [0, 0, 1, 0], [], []>} : vector<32x16xf32>, vector<512x16xf32>, vector<32x512xf32> -> vector<32x512xf32>
    %7 = vector.broadcast %3 : vector<32x1xf32> to vector<32x512xf32>
    %8 = arith.addf %6, %7 : vector<32x512xf32>
    %9 = math.tanh %8 : vector<32x512xf32>
    %c0_10 = arith.constant 0 : index
    %c0_11 = arith.constant 0 : index
    %10 = vector.load %arg5[%c0_10, %c0_11] : memref<16x32xf32, #tpu.memory_space<vmem>>, vector<16x32xf32>
    %cst_12 = arith.constant dense<0.000000e+00> : vector<16x512xf32>
    %11 = tpu.matmul %10, %9, %cst_12 {dimension_numbers = #tpu.dot_dimension_numbers<[1], [0], [0], [1], [0, 0, 1, 1], [], []>} : vector<16x32xf32>, vector<32x512xf32>, vector<16x512xf32> -> vector<16x512xf32>
    %12 = vector.broadcast %4 : vector<16x1xf32> to vector<16x512xf32>
    %13 = arith.addf %11, %12 : vector<16x512xf32>
    %14 = vector.extract_strided_slice %13 {offsets = [0, 0], sizes = [8, 512], strides = [1, 1]} : vector<16x512xf32> to vector<8x512xf32>
    %15 = vector.extract_strided_slice %13 {offsets = [8, 0], sizes = [8, 512], strides = [1, 1]} : vector<16x512xf32> to vector<8x512xf32>
    %cst_13 = arith.constant 0.000000e+00 : f32
    %16 = vector.broadcast %cst_13 : f32 to vector<8x512xf32>
    %17 = arith.subf %16, %15 : vector<8x512xf32>
    %18 = math.exp %17 : vector<8x512xf32>
    %19 = tpu.iota {dimensions = array<i32: 0>} : vector<8x8xi32>
    %20 = tpu.iota {dimensions = array<i32: 1>} : vector<8x8xi32>
    %21 = arith.cmpi eq, %19, %20 : vector<8x8xi32>
    %cst_14 = arith.constant 1.000000e+00 : f32
    %cst_15 = arith.constant 0.000000e+00 : f32
    %22 = vector.broadcast %cst_14 : f32 to vector<8x8xf32>
    %23 = vector.broadcast %cst_15 : f32 to vector<8x8xf32>
    %24 = arith.select %21, %22, %23 : vector<8x8xi1>, vector<8x8xf32>
    %cst_16 = arith.constant dense<0.000000e+00> : vector<8x512xf32>
    %25 = tpu.matmul %24, %0, %cst_16 {dimension_numbers = #tpu.dot_dimension_numbers<[1], [1], [0], [0], [0, 0, 1, 0], [], []>} : vector<8x8xf32>, vector<512x8xf32>, vector<8x512xf32> -> vector<8x512xf32>
    %cst_17 = arith.constant dense<0.000000e+00> : vector<8x512xf32>
    %26 = tpu.matmul %24, %1, %cst_17 {dimension_numbers = #tpu.dot_dimension_numbers<[1], [1], [0], [0], [0, 0, 1, 0], [], []>} : vector<8x8xf32>, vector<512x8xf32>, vector<8x512xf32> -> vector<8x512xf32>
    %27 = arith.subf %25, %14 : vector<8x512xf32>
    %28 = arith.mulf %27, %18 : vector<8x512xf32>
    %cst_18 = arith.constant -5.000000e-01 : f32
    %29 = vector.broadcast %cst_18 : f32 to vector<8x512xf32>
    %30 = arith.mulf %29, %28 : vector<8x512xf32>
    %31 = arith.mulf %30, %28 : vector<8x512xf32>
    %32 = arith.subf %31, %15 : vector<8x512xf32>
    %cst_19 = arith.constant dense<0.000000e+00> : vector<512xf32>
    %33 = vector.multi_reduction <add>, %32, %cst_19 [0] : vector<8x512xf32> to vector<512xf32>
    %34 = vector.shape_cast %33 : vector<512xf32> to vector<1x512xf32>
    %35 = arith.mulf %25, %25 : vector<8x512xf32>
    %cst_20 = arith.constant dense<0.000000e+00> : vector<512xf32>
    %36 = vector.multi_reduction <add>, %35, %cst_20 [0] : vector<8x512xf32> to vector<512xf32>
    %37 = vector.shape_cast %36 : vector<512xf32> to vector<1x512xf32>
    %cst_21 = arith.constant 7.35150814 : f32
    %38 = vector.broadcast %cst_21 : f32 to vector<1x512xf32>
    %39 = arith.subf %34, %38 : vector<1x512xf32>
    %cst_22 = arith.constant 5.000000e-01 : f32
    %40 = vector.broadcast %cst_22 : f32 to vector<1x512xf32>
    %41 = arith.mulf %40, %37 : vector<1x512xf32>
    %42 = arith.addf %34, %41 : vector<1x512xf32>
    %43 = arith.subf %26, %14 : vector<8x512xf32>
    %44 = arith.mulf %43, %18 : vector<8x512xf32>
    %cst_23 = arith.constant -5.000000e-01 : f32
    %45 = vector.broadcast %cst_23 : f32 to vector<8x512xf32>
    %46 = arith.mulf %45, %44 : vector<8x512xf32>
    %47 = arith.mulf %46, %44 : vector<8x512xf32>
    %48 = arith.subf %47, %15 : vector<8x512xf32>
    %cst_24 = arith.constant dense<0.000000e+00> : vector<512xf32>
    %49 = vector.multi_reduction <add>, %48, %cst_24 [0] : vector<8x512xf32> to vector<512xf32>
    %50 = vector.shape_cast %49 : vector<512xf32> to vector<1x512xf32>
    %51 = arith.mulf %26, %26 : vector<8x512xf32>
    %cst_25 = arith.constant dense<0.000000e+00> : vector<512xf32>
    %52 = vector.multi_reduction <add>, %51, %cst_25 [0] : vector<8x512xf32> to vector<512xf32>
    %53 = vector.shape_cast %52 : vector<512xf32> to vector<1x512xf32>
    %cst_26 = arith.constant 5.000000e-01 : f32
    %54 = vector.broadcast %cst_26 : f32 to vector<1x512xf32>
    %55 = arith.mulf %54, %53 : vector<1x512xf32>
    %56 = arith.addf %50, %55 : vector<1x512xf32>
    %c0_27 = arith.constant 0 : index
    %c0_28 = arith.constant 0 : index
    %57 = vector.load %arg7[%c0_27, %c0_28] : memref<2x512xf32, #tpu.memory_space<vmem>>, vector<1x512xf32>
    tpu.vector_store %arg7[%c0_27, %c0_28], %39 {strides = array<i32>} : memref<2x512xf32, #tpu.memory_space<vmem>>, vector<1x512xf32>,
    %58 = arith.negf %42 : vector<1x512xf32>
    %59 = math.exp %58 : vector<1x512xf32>
    %cst_29 = arith.constant 1.000000e+00 : f32
    %60 = vector.broadcast %cst_29 : f32 to vector<1x512xf32>
    %61 = arith.addf %60, %59 : vector<1x512xf32>
    %62 = arith.divf %60, %61 : vector<1x512xf32>
    %63 = arith.negf %56 : vector<1x512xf32>
    %64 = math.exp %63 : vector<1x512xf32>
    %cst_30 = arith.constant 1.000000e+00 : f32
    %65 = vector.broadcast %cst_30 : f32 to vector<1x512xf32>
    %66 = arith.addf %65, %64 : vector<1x512xf32>
    %67 = arith.divf %65, %66 : vector<1x512xf32>
    %68 = arith.addf %62, %67 : vector<1x512xf32>
    %cst_31 = arith.constant 1.000000e+00 : f32
    %69 = vector.broadcast %cst_31 : f32 to vector<1x512xf32>
    %70 = arith.subf %68, %69 : vector<1x512xf32>
    %c1 = arith.constant 1 : index
    %c0_32 = arith.constant 0 : index
    %71 = vector.load %arg7[%c1, %c0_32] : memref<2x512xf32, #tpu.memory_space<vmem>>, vector<1x512xf32>
    tpu.vector_store %arg7[%c1, %c0_32], %70 {strides = array<i32>} : memref<2x512xf32, #tpu.memory_space<vmem>>, vector<1x512xf32>,
    return
  }
  func.func @transform_0(%arg0: i32) -> (i32, i32) {
    %c0_i32 = arith.constant 0 : i32
    %c0_i32_0 = arith.constant 0 : i32
    return %arg0, %c0_i32 : i32, i32
  }
  func.func @transform_1(%arg0: i32) -> (i32, i32) {
    %c0_i32 = arith.constant 0 : i32
    %c0_i32_0 = arith.constant 0 : i32
    return %arg0, %c0_i32 : i32, i32
  }
  func.func @transform_2(%arg0: i32) -> (i32, i32) {
    %c0_i32 = arith.constant 0 : i32
    %c0_i32_0 = arith.constant 0 : i32
    return %arg0, %c0_i32 : i32, i32
  }
  func.func @transform_3(%arg0: i32) -> (i32, i32) {
    %c0_i32 = arith.constant 0 : i32
    %c0_i32_0 = arith.constant 0 : i32
    %c0_i32_1 = arith.constant 0 : i32
    return %c0_i32, %c0_i32_0 : i32, i32
  }
  func.func @transform_4(%arg0: i32) -> (i32, i32) {
    %c0_i32 = arith.constant 0 : i32
    %c0_i32_0 = arith.constant 0 : i32
    %c0_i32_1 = arith.constant 0 : i32
    return %c0_i32, %c0_i32_0 : i32, i32
  }
  func.func @transform_5(%arg0: i32) -> (i32, i32) {
    %c0_i32 = arith.constant 0 : i32
    %c0_i32_0 = arith.constant 0 : i32
    %c0_i32_1 = arith.constant 0 : i32
    return %c0_i32, %c0_i32_0 : i32, i32
  }
  func.func @transform_6(%arg0: i32) -> (i32, i32) {
    %c0_i32 = arith.constant 0 : i32
    %c0_i32_0 = arith.constant 0 : i32
    return %c0_i32, %arg0 : i32, i32
  }
}

</mosaic_0001>

<llo_original>
// kernel: bnpe_loss.1
$region0: #{bnpe_loss.1}
  #allocation0 [shape = 'u32[]', space=smem, size = 0x4, offset = 0x4, fixed_abs, tag = 'smem constant byte address 0x4 - core index']
  #allocation1 [shape = 'u32[72,128]{1,0:T(1,128)}', space=vmem, size = 0x9000, scoped, tag = 'internal scratch']
  %s0 = inlined_call_operand.vmem [shape: f32[1024,8], index: 0, kind: input, shape index: {}]
  %s1 = inlined_call_operand.vmem [shape: f32[1024,8], index: 1, kind: input, shape index: {}]
  %s2 = inlined_call_operand.vmem [shape: f32[1024,16], index: 2, kind: input, shape index: {}]
  %s3 = inlined_call_operand.vmem [shape: f32[32,16], index: 3, kind: input, shape index: {}]
  %s4 = inlined_call_operand.vmem [shape: f32[16,32], index: 4, kind: input, shape index: {}]
  %s5 = inlined_call_operand.vmem [shape: f32[48,1], index: 5, kind: input, shape index: {}]
  %s6 = inlined_call_operand.vmem [shape: f32[2,1024], index: 6, kind: output, shape index: {}]
  %s7 = sld [smem:[#allocation0]]
  $region57: #{bnpe_loss.1} parent=0
    _
  %s9 = ssub.s32 1, %s7
  %s10 = scalar_select 0, %s9, %s7
  loop: start=0, step=1, limit=4
  $region2: #{bnpe_loss.1} parent=0 // loop_pre_header
    _
  $region3: #{bnpe_loss.1} parent=0 // loop_header
    %s12 = sphi 0, %s16
    %p13 = scmp.ge.s32.totalorder %s12, 4
    %s22 = sphi 0, %s24
    %s25 = sphi 0, %s22
    %s26 = sphi 0, %s25
    %s42 = sphi 0, %s26
    %s48 = sphi 0, %s50
    %s51 = sphi 0, %s48
    %s52 = sphi 0, %s51
    %s68 = sphi 0, %s52
    %s74 = sphi 0, %s76
    %s77 = sphi 0, %s74
    %s78 = sphi 0, %s77
    %s94 = sphi 0, %s78
    %s98 = sphi 0, %s98
    %s100 = sphi 0, %s98
    %s101 = sphi 0, %s100
    %s115 = sphi 0, %s101
    %s119 = sphi 0, %s119
    %s121 = sphi 0, %s119
    %s122 = sphi 0, %s121
    %s136 = sphi 0, %s122
    %s140 = sphi 0, %s140
    %s142 = sphi 0, %s140
    %s143 = sphi 0, %s142
    %s157 = sphi 0, %s143
    %s163 = sphi 0, %s165
    %s166 = sphi 0, %s163
    %s167 = sphi 0, %s166
    %s183 = sphi 0, %s167
  $region4: #{bnpe_loss.1} parent=0 // loop_header_branch
    %15 = sbr.rel (%p13) target = $region8
  $region5: #{bnpe_loss.1} parent=0 // loop_body
    %s17 = ssub.s32 %s12, 1
    %s18 = ssub.s32 %s12, 2
    %s19 = sadd.s32 %s12, 1
    %s20 = ssub.s32 %s12, %s19
    %p21 = scmp.eq.s32.totalorder %s20, 0
    %s23 = sadd.s32 %s22, 1
    %s24 = scalar_select %p21, %s22, %s23
    %p27 = pneg %p21
    %p28 = scmp.eq.s32.totalorder %s12, 1
    %p29 = por %p27, %p28
    %p30 = scmp.ne.s32.totalorder %s22, %s25
    %p31 = scmp.eq.s32.totalorder %s12, 0
    %p32 = por %p30, %p31
    %p33 = scmp.ne.s32.totalorder %s22, %s25
    %p34 = scmp.eq.s32.totalorder %s17, 1
    %p35 = por %p33, %p34
    %p36 = scmp.ne.s32.totalorder %s25, %s26
    %p37 = scmp.eq.s32.totalorder %s17, 0
    %p38 = por %p36, %p37
    %p39 = scmp.ne.s32.totalorder %s25, %s26
    %p40 = scmp.eq.s32.totalorder %s18, 1
    %p41 = por %p39, %p40
    %p43 = scmp.ne.s32.totalorder %s26, %s42
    %p44 = scmp.eq.s32.totalorder %s18, 0
    %p45 = por %p43, %p44
    %s46 = ssub.s32 %s12, %s19
    %p47 = scmp.eq.s32.totalorder %s46, 0
    %s49 = sadd.s32 %s48, 1
    %s50 = scalar_select %p47, %s48, %s49
    %p53 = pneg %p47
    %p54 = scmp.eq.s32.totalorder %s12, 1
    %p55 = por %p53, %p54
    %p56 = scmp.ne.s32.totalorder %s48, %s51
    %p57 = scmp.eq.s32.totalorder %s12, 0
    %p58 = por %p56, %p57
    %p59 = scmp.ne.s32.totalorder %s48, %s51
    %p60 = scmp.eq.s32.totalorder %s17, 1
    %p61 = por %p59, %p60
    %p62 = scmp.ne.s32.totalorder %s51, %s52
    %p63 = scmp.eq.s32.totalorder %s17, 0
    %p64 = por %p62, %p63
    %p65 = scmp.ne.s32.totalorder %s51, %s52
    %p66 = scmp.eq.s32.totalorder %s18, 1
    %p67 = por %p65, %p66
    %p69 = scmp.ne.s32.totalorder %s52, %s68
    %p70 = scmp.eq.s32.totalorder %s18, 0
    %p71 = por %p69, %p70
    %s72 = ssub.s32 %s12, %s19
    %p73 = scmp.eq.s32.totalorder %s72, 0
    %s75 = sadd.s32 %s74, 1
    %s76 = scalar_select %p73, %s74, %s75
    %p79 = pneg %p73
    %p80 = scmp.eq.s32.totalorder %s12, 1
    %p81 = por %p79, %p80
    %p82 = scmp.ne.s32.totalorder %s74, %s77
    %p83 = scmp.eq.s32.totalorder %s12, 0
    %p84 = por %p82, %p83
    %p85 = scmp.ne.s32.totalorder %s74, %s77
    %p86 = scmp.eq.s32.totalorder %s17, 1
    %p87 = por %p85, %p86
    %p88 = scmp.ne.s32.totalorder %s77, %s78
    %p89 = scmp.eq.s32.totalorder %s17, 0
    %p90 = por %p88, %p89
    %p91 = scmp.ne.s32.totalorder %s77, %s78
    %p92 = scmp.eq.s32.totalorder %s18, 1
    %p93 = por %p91, %p92
    %p95 = scmp.ne.s32.totalorder %s78, %s94
    %p96 = scmp.eq.s32.totalorder %s18, 0
    %p97 = por %p95, %p96
    %s99 = sadd.s32 %s98, 1
    %p102 = scmp.eq.s32.totalorder %s12, 1
    %p103 = scmp.ne.s32.totalorder %s98, %s100
    %p104 = scmp.eq.s32.totalorder %s12, 0
    %p105 = por %p103, %p104
    %p106 = scmp.ne.s32.totalorder %s98, %s100
    %p107 = scmp.eq.s32.totalorder %s17, 1
    %p108 = por %p106, %p107
    %p109 = scmp.ne.s32.totalorder %s100, %s101
    %p110 = scmp.eq.s32.totalorder %s17, 0
    %p111 = por %p109, %p110
    %p112 = scmp.ne.s32.totalorder %s100, %s101
    %p113 = scmp.eq.s32.totalorder %s18, 1
    %p114 = por %p112, %p113
    %p116 = scmp.ne.s32.totalorder %s101, %s115
    %p117 = scmp.eq.s32.totalorder %s18, 0
    %p118 = por %p116, %p117
    %s120 = sadd.s32 %s119, 1
    %p123 = scmp.eq.s32.totalorder %s12, 1
    %p124 = scmp.ne.s32.totalorder %s119, %s121
    %p125 = scmp.eq.s32.totalorder %s12, 0
    %p126 = por %p124, %p125
    %p127 = scmp.ne.s32.totalorder %s119, %s121
    %p128 = scmp.eq.s32.totalorder %s17, 1
    %p129 = por %p127, %p128
    %p130 = scmp.ne.s32.totalorder %s121, %s122
    %p131 = scmp.eq.s32.totalorder %s17, 0
    %p132 = por %p130, %p131
    %p133 = scmp.ne.s32.totalorder %s121, %s122
    %p134 = scmp.eq.s32.totalorder %s18, 1
    %p135 = por %p133, %p134
    %p137 = scmp.ne.s32.totalorder %s122, %s136
    %p138 = scmp.eq.s32.totalorder %s18, 0
    %p139 = por %p137, %p138
    %s141 = sadd.s32 %s140, 1
    %p144 = scmp.eq.s32.totalorder %s12, 1
    %p145 = scmp.ne.s32.totalorder %s140, %s142
    %p146 = scmp.eq.s32.totalorder %s12, 0
    %p147 = por %p145, %p146
    %p148 = scmp.ne.s32.totalorder %s140, %s142
    %p149 = scmp.eq.s32.totalorder %s17, 1
    %p150 = por %p148, %p149
    %p151 = scmp.ne.s32.totalorder %s142, %s143
    %p152 = scmp.eq.s32.totalorder %s17, 0
    %p153 = por %p151, %p152
    %p154 = scmp.ne.s32.totalorder %s142, %s143
    %p155 = scmp.eq.s32.totalorder %s18, 1
    %p156 = por %p154, %p155
    %p158 = scmp.ne.s32.totalorder %s143, %s157
    %p159 = scmp.eq.s32.totalorder %s18, 0
    %p160 = por %p158, %p159
    %s161 = ssub.s32 %s12, %s19
    %p162 = scmp.eq.s32.totalorder %s161, 0
    %s164 = sadd.s32 %s163, 1
    %s165 = scalar_select %p162, %s163, %s164
    %p168 = pneg %p162
    %p169 = scmp.eq.s32.totalorder %s12, 1
    %p170 = por %p168, %p169
    %p171 = scmp.ne.s32.totalorder %s163, %s166
    %p172 = scmp.eq.s32.totalorder %s12, 0
    %p173 = por %p171, %p172
    %p174 = scmp.ne.s32.totalorder %s163, %s166
    %p175 = scmp.eq.s32.totalorder %s17, 1
    %p176 = por %p174, %p175
    %p177 = scmp.ne.s32.totalorder %s166, %s167
    %p178 = scmp.eq.s32.totalorder %s17, 0
    %p179 = por %p177, %p178
    %p180 = scmp.ne.s32.totalorder %s166, %s167
    %p181 = scmp.eq.s32.totalorder %s18, 1
    %p182 = por %p180, %p181
    %p184 = scmp.ne.s32.totalorder %s167, %s183
    %p185 = scmp.eq.s32.totalorder %s18, 0
    %p186 = por %p184, %p185
    %p187 = scmp.le.s32.totalorder 1, %s12
    %p188 = scmp.lt.s32.totalorder %s12, 3
    %p189 = pnand %p187, %p188
    %p190 = pneg %p189
    // Predicated region
    $region9: #{bnpe_loss.1} parent=5 // pred_check
      _
    $region10: #{bnpe_loss.1} parent=5 // pred_check_branch
      %192 = sbr.rel (%p189) target = $region12
    $region11: #{bnpe_loss.1} parent=5 // pred_region
      %s193 = ssub.s32 %s12, 1
      // Predicated region
      $region13: #{bnpe_loss.1} parent=11 // pred_check
        %p194 = pneg %p111
      $region14: #{bnpe_loss.1} parent=11 // pred_check_branch
        %196 = sbr.rel (%p194) target = $region16
      $region15: #{bnpe_loss.1} parent=11 // pred_region
        _
      $region16: #{bnpe_loss.1} parent=11 // pred_fallthru
        _
      // Predicated region
      $region17: #{bnpe_loss.1} parent=11 // pred_check
        %p197 = pneg %p132
      $region18: #{bnpe_loss.1} parent=11 // pred_check_branch
        %199 = sbr.rel (%p197) target = $region20
      $region19: #{bnpe_loss.1} parent=11 // pred_region
        _
      $region20: #{bnpe_loss.1} parent=11 // pred_fallthru
        _
      // Predicated region
      $region21: #{bnpe_loss.1} parent=11 // pred_check
        %p200 = pneg %p153
      $region22: #{bnpe_loss.1} parent=11 // pred_check_branch
        %202 = sbr.rel (%p200) target = $region24
      $region23: #{bnpe_loss.1} parent=11 // pred_region
        _
      $region24: #{bnpe_loss.1} parent=11 // pred_fallthru
        _
    $region12: #{bnpe_loss.1} parent=5 // pred_fallthru
      _
    %p203 = scmp.lt.s32.totalorder %s12, 2
    // Predicated region
    $region25: #{bnpe_loss.1} parent=5 // pred_check
      %p204 = pneg %p203
    $region26: #{bnpe_loss.1} parent=5 // pred_check_branch
      %206 = sbr.rel (%p204) target = $region28
    $region27: #{bnpe_loss.1} parent=5 // pred_region
      // Predicated region
      $region29: #{bnpe_loss.1} parent=27 // pred_check
        %p207 = pneg %p32
      $region30: #{bnpe_loss.1} parent=27 // pred_check_branch
        %209 = sbr.rel (%p207) target = $region32
      $region31: #{bnpe_loss.1} parent=27 // pred_region
        %s210 = smul.u32 64, %s12
        %p211 = scmp.lt.s32.totalorder %s210, 127
        %s212 = scalar_select %p211, %s210, 127
        %s213 = smul.addr %s212, 8
        %s214 = scalar_lea.vmem %s0, %s213
        %s215 = smul.u32 64, %s12
      $region32: #{bnpe_loss.1} parent=27 // pred_fallthru
        _
      // Predicated region
      $region33: #{bnpe_loss.1} parent=27 // pred_check
        %p216 = pneg %p58
      $region34: #{bnpe_loss.1} parent=27 // pred_check_branch
        %218 = sbr.rel (%p216) target = $region36
      $region35: #{bnpe_loss.1} parent=27 // pred_region
        %s219 = smul.u32 64, %s12
        %p220 = scmp.lt.s32.totalorder %s219, 127
        %s221 = scalar_select %p220, %s219, 127
        %s222 = smul.addr %s221, 8
        %s223 = scalar_lea.vmem %s1, %s222
        %s224 = smul.u32 64, %s12
      $region36: #{bnpe_loss.1} parent=27 // pred_fallthru
        _
      // Predicated region
      $region37: #{bnpe_loss.1} parent=27 // pred_check
        %p225 = pneg %p84
      $region38: #{bnpe_loss.1} parent=27 // pred_check_branch
        %227 = sbr.rel (%p225) target = $region40
      $region39: #{bnpe_loss.1} parent=27 // pred_region
        %s228 = smul.u32 64, %s12
        %p229 = scmp.lt.s32.totalorder %s228, 127
        %s230 = scalar_select %p229, %s228, 127
        %s231 = smul.addr %s230, 8
        %s232 = scalar_lea.vmem %s2, %s231
        %s233 = smul.u32 64, %s12
      $region40: #{bnpe_loss.1} parent=27 // pred_fallthru
        _
    $region28: #{bnpe_loss.1} parent=5 // pred_fallthru
      _
    %p234 = scmp.le.s32.totalorder 1, %s12
    %p235 = scmp.lt.s32.totalorder %s12, 3
    %p236 = pnand %p234, %p235
    %p237 = pneg %p236
    // Predicated region
    $region41: #{bnpe_loss.1} parent=5 // pred_check
      _
    $region42: #{bnpe_loss.1} parent=5 // pred_check_branch
      %239 = sbr.rel (%p236) target = $region44
    $region43: #{bnpe_loss.1} parent=5 // pred_region
      %s240 = ssub.s32 %s12, 1
      %s241 = smul.u32 64, %s17
      %p242 = scmp.lt.s32.totalorder %s241, 127
      %s243 = scalar_select %p242, %s241, 127
      %s244 = smul.addr %s243, 8
      %s245 = scalar_lea.vmem %s0, %s244
      %p246 = pneg %p38
      %p247 = pneg %p35
      %s248 = smul.u32 64, %s17
      %p249 = scmp.lt.s32.totalorder %s248, 127
      %s250 = scalar_select %p249, %s248, 127
      %s251 = smul.addr %s250, 8
      %s252 = scalar_lea.vmem %s1, %s251
      %p253 = pneg %p64
      %p254 = pneg %p61
      %s255 = smul.u32 64, %s17
      %p256 = scmp.lt.s32.totalorder %s255, 127
      %s257 = scalar_select %p256, %s255, 127
      %s258 = smul.addr %s257, 8
      %s259 = scalar_lea.vmem %s2, %s258
      %p260 = pneg %p90
      %p261 = pneg %p87
      %p262 = pneg %p111
      %p263 = pneg %p108
      %p264 = pneg %p132
      %p265 = pneg %p129
      %p266 = pneg %p153
      %p267 = pneg %p150
      %p268 = pneg %p179
      %p269 = pneg %p176
      %s270 = smul.u32 4, %s17
      %p271 = scmp.lt.s32.totalorder %s270, 7
      %s272 = scalar_select %p271, %s270, 7
      %s273 = smul.addr %s272, 2
      %s274 = scalar_lea.vmem %s6, %s273
      %s275 = smul.u32 64, %s17
      %p276 = scmp.lt.s32.totalorder %s275, 127
      %s277 = scalar_select %p276, %s275, 127
      %s278 = smul.addr %s277, 8
      %s279 = scalar_lea.vmem %s0, %s278
      %s280 = smul.u32 64, %s17
      %s281 = smul.u32 64, %s17
      %p282 = scmp.lt.s32.totalorder %s281, 127
      %s283 = scalar_select %p282, %s281, 127
      %s284 = smul.addr %s283, 8
      %s285 = scalar_lea.vmem %s1, %s284
      %s286 = smul.u32 64, %s17
      %s287 = smul.u32 64, %s17
      %p288 = scmp.lt.s32.totalorder %s287, 127
      %s289 = scalar_select %p288, %s287, 127
      %s290 = smul.addr %s289, 8
      %s291 = scalar_lea.vmem %s2, %s290
      %s292 = smul.u32 64, %s17
      %s293 = smul.u32 4, %s17
      %p294 = scmp.lt.s32.totalorder %s293, 7
      %s295 = scalar_select %p294, %s293, 7
      %s296 = smul.addr %s295, 2
      %s297 = scalar_lea.vmem %s6, %s296
      %s298 = smul.u32 4, %s17
      %v299 = vld [vmem:[%s279] sm:$0xff]
      %v300 = vld [vmem:[%s279 + $0x8] sm:$0xff]
      %v301 = vld [vmem:[%s279 + $0x10] sm:$0xff]
      %v302 = vld [vmem:[%s279 + $0x18] sm:$0xff]
      %v303 = vld [vmem:[%s279 + $0x20] sm:$0xff]
      %v304 = vld [vmem:[%s279 + $0x28] sm:$0xff]
      %v305 = vld [vmem:[%s279 + $0x30] sm:$0xff]
      %v306 = vld [vmem:[%s279 + $0x38] sm:$0xff]
      %v307 = vld [vmem:[%s279 + $0x40] sm:$0xff]
      %v308 = vld [vmem:[%s279 + $0x48] sm:$0xff]
      %v309 = vld [vmem:[%s279 + $0x50] sm:$0xff]
      %v310 = vld [vmem:[%s279 + $0x58] sm:$0xff]
      %v311 = vld [vmem:[%s279 + $0x60] sm:$0xff]
      %v312 = vld [vmem:[%s279 + $0x68] sm:$0xff]
      %v313 = vld [vmem:[%s279 + $0x70] sm:$0xff]
      %v314 = vld [vmem:[%s279 + $0x78] sm:$0xff]
      %v315 = vld [vmem:[%s279 + $0x80] sm:$0xff]
      %v316 = vld [vmem:[%s279 + $0x88] sm:$0xff]
      %v317 = vld [vmem:[%s279 + $0x90] sm:$0xff]
      %v318 = vld [vmem:[%s279 + $0x98] sm:$0xff]
      %v319 = vld [vmem:[%s279 + $0xa0] sm:$0xff]
      %v320 = vld [vmem:[%s279 + $0xa8] sm:$0xff]
      %v321 = vld [vmem:[%s279 + $0xb0] sm:$0xff]
      %v322 = vld [vmem:[%s279 + $0xb8] sm:$0xff]
      %v323 = vld [vmem:[%s279 + $0xc0] sm:$0xff]
      %v324 = vld [vmem:[%s279 + $0xc8] sm:$0xff]
      %v325 = vld [vmem:[%s279 + $0xd0] sm:$0xff]
      %v326 = vld [vmem:[%s279 + $0xd8] sm:$0xff]
      %v327 = vld [vmem:[%s279 + $0xe0] sm:$0xff]
      %v328 = vld [vmem:[%s279 + $0xe8] sm:$0xff]
      %v329 = vld [vmem:[%s279 + $0xf0] sm:$0xff]
      %v330 = vld [vmem:[%s279 + $0xf8] sm:$0xff]
      %v331 = vld [vmem:[%s279 + $0x100] sm:$0xff]
      %v332 = vld [vmem:[%s279 + $0x108] sm:$0xff]
      %v333 = vld [vmem:[%s279 + $0x110] sm:$0xff]
      %v334 = vld [vmem:[%s279 + $0x118] sm:$0xff]
      %v335 = vld [vmem:[%s279 + $0x120] sm:$0xff]
      %v336 = vld [vmem:[%s279 + $0x128] sm:$0xff]
      %v337 = vld [vmem:[%s279 + $0x130] sm:$0xff]
      %v338 = vld [vmem:[%s279 + $0x138] sm:$0xff]
      %v339 = vld [vmem:[%s279 + $0x140] sm:$0xff]
      %v340 = vld [vmem:[%s279 + $0x148] sm:$0xff]
      %v341 = vld [vmem:[%s279 + $0x150] sm:$0xff]
      %v342 = vld [vmem:[%s279 + $0x158] sm:$0xff]
      %v343 = vld [vmem:[%s279 + $0x160] sm:$0xff]
      %v344 = vld [vmem:[%s279 + $0x168] sm:$0xff]
      %v345 = vld [vmem:[%s279 + $0x170] sm:$0xff]
      %v346 = vld [vmem:[%s279 + $0x178] sm:$0xff]
      %v347 = vld [vmem:[%s279 + $0x180] sm:$0xff]
      %v348 = vld [vmem:[%s279 + $0x188] sm:$0xff]
      %v349 = vld [vmem:[%s279 + $0x190] sm:$0xff]
      %v350 = vld [vmem:[%s279 + $0x198] sm:$0xff]
      %v351 = vld [vmem:[%s279 + $0x1a0] sm:$0xff]
      %v352 = vld [vmem:[%s279 + $0x1a8] sm:$0xff]
      %v353 = vld [vmem:[%s279 + $0x1b0] sm:$0xff]
      %v354 = vld [vmem:[%s279 + $0x1b8] sm:$0xff]
      %v355 = vld [vmem:[%s279 + $0x1c0] sm:$0xff]
      %v356 = vld [vmem:[%s279 + $0x1c8] sm:$0xff]
      %v357 = vld [vmem:[%s279 + $0x1d0] sm:$0xff]
      %v358 = vld [vmem:[%s279 + $0x1d8] sm:$0xff]
      %v359 = vld [vmem:[%s279 + $0x1e0] sm:$0xff]
      %v360 = vld [vmem:[%s279 + $0x1e8] sm:$0xff]
      %v361 = vld [vmem:[%s279 + $0x1f0] sm:$0xff]
      %v362 = vld [vmem:[%s279 + $0x1f8] sm:$0xff]
      %v363 = vld [vmem:[%s285] sm:$0xff]
      %v364 = vld [vmem:[%s285 + $0x8] sm:$0xff]
      %v365 = vld [vmem:[%s285 + $0x10] sm:$0xff]
      %v366 = vld [vmem:[%s285 + $0x18] sm:$0xff]
      %v367 = vld [vmem:[%s285 + $0x20] sm:$0xff]
      %v368 = vld [vmem:[%s285 + $0x28] sm:$0xff]
      %v369 = vld [vmem:[%s285 + $0x30] sm:$0xff]
      %v370 = vld [vmem:[%s285 + $0x38] sm:$0xff]
      %v371 = vld [vmem:[%s285 + $0x40] sm:$0xff]
      %v372 = vld [vmem:[%s285 + $0x48] sm:$0xff]
      %v373 = vld [vmem:[%s285 + $0x50] sm:$0xff]
      %v374 = vld [vmem:[%s285 + $0x58] sm:$0xff]
      %v375 = vld [vmem:[%s285 + $0x60] sm:$0xff]
      %v376 = vld [vmem:[%s285 + $0x68] sm:$0xff]
      %v377 = vld [vmem:[%s285 + $0x70] sm:$0xff]
      %v378 = vld [vmem:[%s285 + $0x78] sm:$0xff]
      %v379 = vld [vmem:[%s285 + $0x80] sm:$0xff]
      %v380 = vld [vmem:[%s285 + $0x88] sm:$0xff]
      %v381 = vld [vmem:[%s285 + $0x90] sm:$0xff]
      %v382 = vld [vmem:[%s285 + $0x98] sm:$0xff]
      %v383 = vld [vmem:[%s285 + $0xa0] sm:$0xff]
      %v384 = vld [vmem:[%s285 + $0xa8] sm:$0xff]
      %v385 = vld [vmem:[%s285 + $0xb0] sm:$0xff]
      %v386 = vld [vmem:[%s285 + $0xb8] sm:$0xff]
      %v387 = vld [vmem:[%s285 + $0xc0] sm:$0xff]
      %v388 = vld [vmem:[%s285 + $0xc8] sm:$0xff]
      %v389 = vld [vmem:[%s285 + $0xd0] sm:$0xff]
      %v390 = vld [vmem:[%s285 + $0xd8] sm:$0xff]
      %v391 = vld [vmem:[%s285 + $0xe0] sm:$0xff]
      %v392 = vld [vmem:[%s285 + $0xe8] sm:$0xff]
      %v393 = vld [vmem:[%s285 + $0xf0] sm:$0xff]
      %v394 = vld [vmem:[%s285 + $0xf8] sm:$0xff]
      %v395 = vld [vmem:[%s285 + $0x100] sm:$0xff]
      %v396 = vld [vmem:[%s285 + $0x108] sm:$0xff]
      %v397 = vld [vmem:[%s285 + $0x110] sm:$0xff]
      %v398 = vld [vmem:[%s285 + $0x118] sm:$0xff]
      %v399 = vld [vmem:[%s285 + $0x120] sm:$0xff]
      %v400 = vld [vmem:[%s285 + $0x128] sm:$0xff]
      %v401 = vld [vmem:[%s285 + $0x130] sm:$0xff]
      %v402 = vld [vmem:[%s285 + $0x138] sm:$0xff]
      %v403 = vld [vmem:[%s285 + $0x140] sm:$0xff]
      %v404 = vld [vmem:[%s285 + $0x148] sm:$0xff]
      %v405 = vld [vmem:[%s285 + $0x150] sm:$0xff]
      %v406 = vld [vmem:[%s285 + $0x158] sm:$0xff]
      %v407 = vld [vmem:[%s285 + $0x160] sm:$0xff]
      %v408 = vld [vmem:[%s285 + $0x168] sm:$0xff]
      %v409 = vld [vmem:[%s285 + $0x170] sm:$0xff]
      %v410 = vld [vmem:[%s285 + $0x178] sm:$0xff]
      %v411 = vld [vmem:[%s285 + $0x180] sm:$0xff]
      %v412 = vld [vmem:[%s285 + $0x188] sm:$0xff]
      %v413 = vld [vmem:[%s285 + $0x190] sm:$0xff]
      %v414 = vld [vmem:[%s285 + $0x198] sm:$0xff]
      %v415 = vld [vmem:[%s285 + $0x1a0] sm:$0xff]
      %v416 = vld [vmem:[%s285 + $0x1a8] sm:$0xff]
      %v417 = vld [vmem:[%s285 + $0x1b0] sm:$0xff]
      %v418 = vld [vmem:[%s285 + $0x1b8] sm:$0xff]
      %v419 = vld [vmem:[%s285 + $0x1c0] sm:$0xff]
      %v420 = vld [vmem:[%s285 + $0x1c8] sm:$0xff]
      %v421 = vld [vmem:[%s285 + $0x1d0] sm:$0xff]
      %v422 = vld [vmem:[%s285 + $0x1d8] sm:$0xff]
      %v423 = vld [vmem:[%s285 + $0x1e0] sm:$0xff]
      %v424 = vld [vmem:[%s285 + $0x1e8] sm:$0xff]
      %v425 = vld [vmem:[%s285 + $0x1f0] sm:$0xff]
      %v426 = vld [vmem:[%s285 + $0x1f8] sm:$0xff]
      %v427 = vld [vmem:[%s291] sm:$0xff]
      %v428 = vld [vmem:[%s291 + $0x8] sm:$0xff]
      %v429 = vld [vmem:[%s291 + $0x10] sm:$0xff]
      %v430 = vld [vmem:[%s291 + $0x18] sm:$0xff]
      %v431 = vld [vmem:[%s291 + $0x20] sm:$0xff]
      %v432 = vld [vmem:[%s291 + $0x28] sm:$0xff]
      %v433 = vld [vmem:[%s291 + $0x30] sm:$0xff]
      %v434 = vld [vmem:[%s291 + $0x38] sm:$0xff]
      %v435 = vld [vmem:[%s291 + $0x40] sm:$0xff]
      %v436 = vld [vmem:[%s291 + $0x48] sm:$0xff]
      %v437 = vld [vmem:[%s291 + $0x50] sm:$0xff]
      %v438 = vld [vmem:[%s291 + $0x58] sm:$0xff]
      %v439 = vld [vmem:[%s291 + $0x60] sm:$0xff]
      %v440 = vld [vmem:[%s291 + $0x68] sm:$0xff]
      %v441 = vld [vmem:[%s291 + $0x70] sm:$0xff]
      %v442 = vld [vmem:[%s291 + $0x78] sm:$0xff]
      %v443 = vld [vmem:[%s291 + $0x80] sm:$0xff]
      %v444 = vld [vmem:[%s291 + $0x88] sm:$0xff]
      %v445 = vld [vmem:[%s291 + $0x90] sm:$0xff]
      %v446 = vld [vmem:[%s291 + $0x98] sm:$0xff]
      %v447 = vld [vmem:[%s291 + $0xa0] sm:$0xff]
      %v448 = vld [vmem:[%s291 + $0xa8] sm:$0xff]
      %v449 = vld [vmem:[%s291 + $0xb0] sm:$0xff]
      %v450 = vld [vmem:[%s291 + $0xb8] sm:$0xff]
      %v451 = vld [vmem:[%s291 + $0xc0] sm:$0xff]
      %v452 = vld [vmem:[%s291 + $0xc8] sm:$0xff]
      %v453 = vld [vmem:[%s291 + $0xd0] sm:$0xff]
      %v454 = vld [vmem:[%s291 + $0xd8] sm:$0xff]
      %v455 = vld [vmem:[%s291 + $0xe0] sm:$0xff]
      %v456 = vld [vmem:[%s291 + $0xe8] sm:$0xff]
      %v457 = vld [vmem:[%s291 + $0xf0] sm:$0xff]
      %v458 = vld [vmem:[%s291 + $0xf8] sm:$0xff]
      %v459 = vld [vmem:[%s291 + $0x100] sm:$0xff]
      %v460 = vld [vmem:[%s291 + $0x108] sm:$0xff]
      %v461 = vld [vmem:[%s291 + $0x110] sm:$0xff]
      %v462 = vld [vmem:[%s291 + $0x118] sm:$0xff]
      %v463 = vld [vmem:[%s291 + $0x120] sm:$0xff]
      %v464 = vld [vmem:[%s291 + $0x128] sm:$0xff]
      %v465 = vld [vmem:[%s291 + $0x130] sm:$0xff]
      %v466 = vld [vmem:[%s291 + $0x138] sm:$0xff]
      %v467 = vld [vmem:[%s291 + $0x140] sm:$0xff]
      %v468 = vld [vmem:[%s291 + $0x148] sm:$0xff]
      %v469 = vld [vmem:[%s291 + $0x150] sm:$0xff]
      %v470 = vld [vmem:[%s291 + $0x158] sm:$0xff]
      %v471 = vld [vmem:[%s291 + $0x160] sm:$0xff]
      %v472 = vld [vmem:[%s291 + $0x168] sm:$0xff]
      %v473 = vld [vmem:[%s291 + $0x170] sm:$0xff]
      %v474 = vld [vmem:[%s291 + $0x178] sm:$0xff]
      %v475 = vld [vmem:[%s291 + $0x180] sm:$0xff]
      %v476 = vld [vmem:[%s291 + $0x188] sm:$0xff]
      %v477 = vld [vmem:[%s291 + $0x190] sm:$0xff]
      %v478 = vld [vmem:[%s291 + $0x198] sm:$0xff]
      %v479 = vld [vmem:[%s291 + $0x1a0] sm:$0xff]
      %v480 = vld [vmem:[%s291 + $0x1a8] sm:$0xff]
      %v481 = vld [vmem:[%s291 + $0x1b0] sm:$0xff]
      %v482 = vld [vmem:[%s291 + $0x1b8] sm:$0xff]
      %v483 = vld [vmem:[%s291 + $0x1c0] sm:$0xff]
      %v484 = vld [vmem:[%s291 + $0x1c8] sm:$0xff]
      %v485 = vld [vmem:[%s291 + $0x1d0] sm:$0xff]
      %v486 = vld [vmem:[%s291 + $0x1d8] sm:$0xff]
      %v487 = vld [vmem:[%s291 + $0x1e0] sm:$0xff]
      %v488 = vld [vmem:[%s291 + $0x1e8] sm:$0xff]
      %v489 = vld [vmem:[%s291 + $0x1f0] sm:$0xff]
      %v490 = vld [vmem:[%s291 + $0x1f8] sm:$0xff]
      %v491 = vld [vmem:[%s5] sm:$0xff]
      %v492 = vld [vmem:[%s5 + $0x8] sm:$0xff]
      %v493 = vld [vmem:[%s5 + $0x10] sm:$0xff]
      %v494 = vld [vmem:[%s5 + $0x18] sm:$0xff]
      %v495 = vld [vmem:[%s5 + $0x20] sm:$0xff]
      %v496 = vld [vmem:[%s5 + $0x28] sm:$0xff]
      %v497 = vld [vmem:[%s3] sm:$0xff]
      %v498 = vld [vmem:[%s3 + $0x8] sm:$0xff]
      %v499 = vld [vmem:[%s3 + $0x10] sm:$0xff]
      %v500 = vld [vmem:[%s3 + $0x18] sm:$0xff]
      %502 = vset.pattern.permute.xlu0 0
      %503 = vperm.xlu0 %502, %v491
      %v504 = vpop.permute.xlu0 %503
      %507 = vset.pattern.permute.xlu0 0
      %508 = vperm.xlu0 %507, %v492
      %v509 = vpop.permute.xlu0 %508
      %512 = vset.pattern.permute.xlu0 0
      %513 = vperm.xlu0 %512, %v493
      %v514 = vpop.permute.xlu0 %513
      %517 = vset.pattern.permute.xlu0 0
      %518 = vperm.xlu0 %517, %v494
      %v519 = vpop.permute.xlu0 %518
      %vm521 = vcmask 130048
      %v523 = vsel %vm521, %v497, 0
      %v526 = vsel %vm521, %v498, 0
      %v529 = vsel %vm521, %v499, 0
      %v532 = vsel %vm521, %v500, 0
      %v535 = vsel %vm521, %v427, 0
      %v538 = vsel %vm521, %v428, 0
      %v541 = vsel %vm521, %v429, 0
      %v544 = vsel %vm521, %v430, 0
      %v547 = vsel %vm521, %v431, 0
      %v550 = vsel %vm521, %v432, 0
      %v553 = vsel %vm521, %v433, 0
      %v556 = vsel %vm521, %v434, 0
      %v559 = vsel %vm521, %v435, 0
      %v562 = vsel %vm521, %v436, 0
      %v565 = vsel %vm521, %v437, 0
      %v568 = vsel %vm521, %v438, 0
      %v571 = vsel %vm521, %v439, 0
      %v574 = vsel %vm521, %v440, 0
      %v577 = vsel %vm521, %v441, 0
      %v580 = vsel %vm521, %v442, 0
      %v583 = vsel %vm521, %v443, 0
      %v586 = vsel %vm521, %v444, 0
      %v589 = vsel %vm521, %v445, 0
      %v592 = vsel %vm521, %v446, 0
      %v595 = vsel %vm521, %v447, 0
      %v598 = vsel %vm521, %v448, 0
      %v601 = vsel %vm521, %v449, 0
      %v604 = vsel %vm521, %v450, 0
      %v607 = vsel %vm521, %v451, 0
      %v610 = vsel %vm521, %v452, 0
      %v613 = vsel %vm521, %v453, 0
      %v616 = vsel %vm521, %v454, 0
      %v619 = vsel %vm521, %v455, 0
      %v622 = vsel %vm521, %v456, 0
      %v625 = vsel %vm521, %v457, 0
      %v628 = vsel %vm521, %v458, 0
      %v631 = vsel %vm521, %v459, 0
      %v634 = vsel %vm521, %v460, 0
      %v637 = vsel %vm521, %v461, 0
      %v640 = vsel %vm521, %v462, 0
      %v643 = vsel %vm521, %v463, 0
      %v646 = vsel %vm521, %v464, 0
      %v649 = vsel %vm521, %v465, 0
      %v652 = vsel %vm521, %v466, 0
      %v655 = vsel %vm521, %v467, 0
      %v658 = vsel %vm521, %v468, 0
      %v661 = vsel %vm521, %v469, 0
      %v664 = vsel %vm521, %v470, 0
      %v667 = vsel %vm521, %v471, 0
      %v670 = vsel %vm521, %v472, 0
      %v673 = vsel %vm521, %v473, 0
      %v676 = vsel %vm521, %v474, 0
      %v679 = vsel %vm521, %v475, 0
      %v682 = vsel %vm521, %v476, 0
      %v685 = vsel %vm521, %v477, 0
      %v688 = vsel %vm521, %v478, 0
      %v691 = vsel %vm521, %v479, 0
      %v694 = vsel %vm521, %v480, 0
      %v697 = vsel %vm521, %v481, 0
      %v700 = vsel %vm521, %v482, 0
      %v703 = vsel %vm521, %v483, 0
      %v706 = vsel %vm521, %v484, 0
      %v709 = vsel %vm521, %v485, 0
      %v712 = vsel %vm521, %v486, 0
      %v715 = vsel %vm521, %v487, 0
      %v718 = vsel %vm521, %v488, 0
      %v721 = vsel %vm521, %v489, 0
      %v724 = vsel %vm521, %v490, 0
      %726 = vmatpush.xpose.msra.mxu0 %v580
      %727 = vmatpush.xpose.msra.mxu0 %v577
      %728 = vmatpush.xpose.msra.mxu0 %v574
      %729 = vmatpush.xpose.msra.mxu0 %v571
      %730 = vmatpush.xpose.msra.mxu0 %v568
      %731 = vmatpush.xpose.msra.mxu0 %v565
      %732 = vmatpush.xpose.msra.mxu0 %v562
      %733 = vmatpush.xpose.msra.mxu0 %v559
      %734 = vmatpush.xpose.msra.mxu0 %v556
      %735 = vmatpush.xpose.msra.mxu0 %v553
      %736 = vmatpush.xpose.msra.mxu0 %v550
      %737 = vmatpush.xpose.msra.mxu0 %v547
      %738 = vmatpush.xpose.msra.mxu0 %v544
      %739 = vmatpush.xpose.msra.mxu0 %v541
      %740 = vmatpush.xpose.msra.mxu0 %v538
      %741 = vmatpush.xpose.msra.mxu0 %v535
      %742 = vmatmul.f32.gmra.mxu0 %v523
      %v743 = vpop.f32.mrf.mxu0
      %v744 = vadd.f32 %v504, %v743
      %745 = vmatmul.f32.gmra.mxu0 %v526
      %v746 = vpop.f32.mrf.mxu0
      %v747 = vadd.f32 %v509, %v746
      %748 = vmatmul.f32.gmra.mxu0 %v529
      %v749 = vpop.f32.mrf.mxu0
      %v750 = vadd.f32 %v514, %v749
      %751 = vmatmul.f32.gmra.mxu0 %v532
      %v752 = vpop.f32.mrf.mxu0
      %v753 = vadd.f32 %v519, %v752
      %754 = vdwg.mxu0
      %755 = vmatpush.xpose.msra.mxu0 %v628
      %756 = vmatpush.xpose.msra.mxu0 %v625
      %757 = vmatpush.xpose.msra.mxu0 %v622
      %758 = vmatpush.xpose.msra.mxu0 %v619
      %759 = vmatpush.xpose.msra.mxu0 %v616
      %760 = vmatpush.xpose.msra.mxu0 %v613
      %761 = vmatpush.xpose.msra.mxu0 %v610
      %762 = vmatpush.xpose.msra.mxu0 %v607
      %763 = vmatpush.xpose.msra.mxu0 %v604
      %764 = vmatpush.xpose.msra.mxu0 %v601
      %765 = vmatpush.xpose.msra.mxu0 %v598
      %766 = vmatpush.xpose.msra.mxu0 %v595
      %767 = vmatpush.xpose.msra.mxu0 %v592
      %768 = vmatpush.xpose.msra.mxu0 %v589
      %769 = vmatpush.xpose.msra.mxu0 %v586
      %770 = vmatpush.xpose.msra.mxu0 %v583
      %771 = vmatmul.f32.gmra.mxu0 %v523
      %v772 = vpop.f32.mrf.mxu0
      %v773 = vadd.f32 %v504, %v772
      %774 = vmatmul.f32.gmra.mxu0 %v526
      %v775 = vpop.f32.mrf.mxu0
      %v776 = vadd.f32 %v509, %v775
      %777 = vmatmul.f32.gmra.mxu0 %v529
      %v778 = vpop.f32.mrf.mxu0
      %v779 = vadd.f32 %v514, %v778
      %780 = vmatmul.f32.gmra.mxu0 %v532
      %v781 = vpop.f32.mrf.mxu0
      %v782 = vadd.f32 %v519, %v781
      %783 = vdwg.mxu0
      %784 = vmatpush.xpose.msra.mxu0 %v676
      %785 = vmatpush.xpose.msra.mxu0 %v673
      %786 = vmatpush.xpose.msra.mxu0 %v670
      %787 = vmatpush.xpose.msra.mxu0 %v667
      %788 = vmatpush.xpose.msra.mxu0 %v664
      %789 = vmatpush.xpose.msra.mxu0 %v661
      %790 = vmatpush.xpose.msra.mxu0 %v658
      %791 = vmatpush.xpose.msra.mxu0 %v655
      %792 = vmatpush.xpose.msra.mxu0 %v652
      %793 = vmatpush.xpose.msra.mxu0 %v649
      %794 = vmatpush.xpose.msra.mxu0 %v646
      %795 = vmatpush.xpose.msra.mxu0 %v643
      %796 = vmatpush.xpose.msra.mxu0 %v640
      %797 = vmatpush.xpose.msra.mxu0 %v637
      %798 = vmatpush.xpose.msra.mxu0 %v634
      %799 = vmatpush.xpose.msra.mxu0 %v631
      %800 = vmatmul.f32.gmra.mxu0 %v523
      %v801 = vpop.f32.mrf.mxu0
      %v802 = vadd.f32 %v504, %v801
      %803 = vmatmul.f32.gmra.mxu0 %v526
      %v804 = vpop.f32.mrf.mxu0
      %v805 = vadd.f32 %v509, %v804
      %806 = vmatmul.f32.gmra.mxu0 %v529
      %v807 = vpop.f32.mrf.mxu0
      %v808 = vadd.f32 %v514, %v807
      %809 = vmatmul.f32.gmra.mxu0 %v532
      %v810 = vpop.f32.mrf.mxu0
      %v811 = vadd.f32 %v519, %v810
      %812 = vdwg.mxu0
      %813 = vmatpush.xpose.msra.mxu0 %v724
      %814 = vmatpush.xpose.msra.mxu0 %v721
      %815 = vmatpush.xpose.msra.mxu0 %v718
      %816 = vmatpush.xpose.msra.mxu0 %v715
      %817 = vmatpush.xpose.msra.mxu0 %v712
      %818 = vmatpush.xpose.msra.mxu0 %v709
      %819 = vmatpush.xpose.msra.mxu0 %v706
      %820 = vmatpush.xpose.msra.mxu0 %v703
      %821 = vmatpush.xpose.msra.mxu0 %v700
      %822 = vmatpush.xpose.msra.mxu0 %v697
      %823 = vmatpush.xpose.msra.mxu0 %v694
      %824 = vmatpush.xpose.msra.mxu0 %v691
      %825 = vmatpush.xpose.msra.mxu0 %v688
      %826 = vmatpush.xpose.msra.mxu0 %v685
      %827 = vmatpush.xpose.msra.mxu0 %v682
      %828 = vmatpush.xpose.msra.mxu0 %v679
      %829 = vmatmul.f32.gmra.mxu0 %v523
      %v830 = vpop.f32.mrf.mxu0
      %v831 = vadd.f32 %v504, %v830
      %832 = vmatmul.f32.gmra.mxu0 %v526
      %v833 = vpop.f32.mrf.mxu0
      %v834 = vadd.f32 %v509, %v833
      %835 = vmatmul.f32.gmra.mxu0 %v529
      %v836 = vpop.f32.mrf.mxu0
      %v837 = vadd.f32 %v514, %v836
      %838 = vmatmul.f32.gmra.mxu0 %v532
      %v839 = vpop.f32.mrf.mxu0
      %v840 = vadd.f32 %v519, %v839
      %841 = vdwg.mxu0
      %v842 = vtanh.pop %v744
      %v843 = vtanh.pop %v773
      %v844 = vtanh.pop %v802
      %v845 = vtanh.pop %v831
      %v846 = vtanh.pop %v747
      %v847 = vtanh.pop %v776
      %v848 = vtanh.pop %v805
      %v849 = vtanh.pop %v834
      %v850 = vtanh.pop %v750
      %v851 = vtanh.pop %v779
      %v852 = vtanh.pop %v808
      %v853 = vtanh.pop %v837
      %v854 = vtanh.pop %v753
      %v855 = vtanh.pop %v782
      %v856 = vtanh.pop %v811
      %v857 = vtanh.pop %v840
      %v858 = vld [vmem:[%s4] sm:$0xff]
      %v859 = vld [vmem:[%s4 + $0x8] sm:$0xff]
      %861 = vset.pattern.permute.xlu0 0
      %862 = vperm.xlu0 %861, %v495
      %v863 = vpop.permute.xlu0 %862
      %866 = vset.pattern.permute.xlu0 0
      %867 = vperm.xlu0 %866, %v496
      %v868 = vpop.permute.xlu0 %867
      %vm870 = vcmask 261120
      %v872 = vsel %vm870, %v858, 0
      %v875 = vsel %vm870, %v859, 0
      %877 = vmatpush.msra.mxu0 0.0
      %878 = vmatpush.msra.mxu0 0.0
      %879 = vmatpush.msra.mxu0 0.0
      %880 = vmatpush.msra.mxu0 0.0
      %881 = vmatpush.msra.mxu0 0.0
      %882 = vmatpush.msra.mxu0 0.0
      %883 = vmatpush.msra.mxu0 0.0
      %884 = vmatpush.msra.mxu0 0.0
      %885 = vmatpush.msra.mxu0 0.0
      %886 = vmatpush.msra.mxu0 0.0
      %887 = vmatpush.msra.mxu0 0.0
      %888 = vmatpush.msra.mxu0 0.0
      %889 = vmatpush.msra.mxu0 %v854
      %890 = vmatpush.msra.mxu0 %v850
      %891 = vmatpush.msra.mxu0 %v846
      %892 = vmatpush.msra.mxu0 %v842
      %893 = vmatmul.f32.gmra.mxu0 %v872
      %v894 = vpop.f32.mrf.mxu0
      %v895 = vadd.f32 %v863, %v894
      %896 = vmatmul.f32.gmra.mxu0 %v875
      %v897 = vpop.f32.mrf.mxu0
      %v898 = vadd.f32 %v868, %v897
      %899 = vdwg.mxu0
      %900 = vmatpush.msra.mxu0 0.0
      %901 = vmatpush.msra.mxu0 0.0
      %902 = vmatpush.msra.mxu0 0.0
      %903 = vmatpush.msra.mxu0 0.0
      %904 = vmatpush.msra.mxu0 0.0
      %905 = vmatpush.msra.mxu0 0.0
      %906 = vmatpush.msra.mxu0 0.0
      %907 = vmatpush.msra.mxu0 0.0
      %908 = vmatpush.msra.mxu0 0.0
      %909 = vmatpush.msra.mxu0 0.0
      %910 = vmatpush.msra.mxu0 0.0
      %911 = vmatpush.msra.mxu0 0.0
      %912 = vmatpush.msra.mxu0 %v855
      %913 = vmatpush.msra.mxu0 %v851
      %914 = vmatpush.msra.mxu0 %v847
      %915 = vmatpush.msra.mxu0 %v843
      %916 = vmatmul.f32.gmra.mxu0 %v872
      %v917 = vpop.f32.mrf.mxu0
      %v918 = vadd.f32 %v863, %v917
      %919 = vmatmul.f32.gmra.mxu0 %v875
      %v920 = vpop.f32.mrf.mxu0
      %v921 = vadd.f32 %v868, %v920
      %922 = vdwg.mxu0
      %923 = vmatpush.msra.mxu0 0.0
      %924 = vmatpush.msra.mxu0 0.0
      %925 = vmatpush.msra.mxu0 0.0
      %926 = vmatpush.msra.mxu0 0.0
      %927 = vmatpush.msra.mxu0 0.0
      %928 = vmatpush.msra.mxu0 0.0
      %929 = vmatpush.msra.mxu0 0.0
      %930 = vmatpush.msra.mxu0 0.0
      %931 = vmatpush.msra.mxu0 0.0
      %932 = vmatpush.msra.mxu0 0.0
      %933 = vmatpush.msra.mxu0 0.0
      %934 = vmatpush.msra.mxu0 0.0
      %935 = vmatpush.msra.mxu0 %v856
      %936 = vmatpush.msra.mxu0 %v852
      %937 = vmatpush.msra.mxu0 %v848
      %938 = vmatpush.msra.mxu0 %v844
      %939 = vmatmul.f32.gmra.mxu0 %v872
      %v940 = vpop.f32.mrf.mxu0
      %v941 = vadd.f32 %v863, %v940
      %942 = vmatmul.f32.gmra.mxu0 %v875
      %v943 = vpop.f32.mrf.mxu0
      %v944 = vadd.f32 %v868, %v943
      %945 = vdwg.mxu0
      %946 = vmatpush.msra.mxu0 0.0
      %947 = vmatpush.msra.mxu0 0.0
      %948 = vmatpush.msra.mxu0 0.0
      %949 = vmatpush.msra.mxu0 0.0
      %950 = vmatpush.msra.mxu0 0.0
      %951 = vmatpush.msra.mxu0 0.0
      %952 = vmatpush.msra.mxu0 0.0
      %953 = vmatpush.msra.mxu0 0.0
      %954 = vmatpush.msra.mxu0 0.0
      %955 = vmatpush.msra.mxu0 0.0
      %956 = vmatpush.msra.mxu0 0.0
      %957 = vmatpush.msra.mxu0 0.0
      %958 = vmatpush.msra.mxu0 %v857
      %959 = vmatpush.msra.mxu0 %v853
      %960 = vmatpush.msra.mxu0 %v849
      %961 = vmatpush.msra.mxu0 %v845
      %962 = vmatmul.f32.gmra.mxu0 %v872
      %v963 = vpop.f32.mrf.mxu0
      %v964 = vadd.f32 %v863, %v963
      %965 = vmatmul.f32.gmra.mxu0 %v875
      %v966 = vpop.f32.mrf.mxu0
      %v967 = vadd.f32 %v868, %v966
      %968 = vdwg.mxu0
      %v969 = vsub.f32 0.0, %v898
      %v970 = vsub.f32 0.0, %v921
      %v971 = vsub.f32 0.0, %v944
      %v972 = vsub.f32 0.0, %v967
      %v973 = vmul.f32 %v969, 1.442695
      %v974 = vpow.pop %v973
      %v975 = vmul.f32 %v970, 1.442695
      %v976 = vpow.pop %v975
      %v977 = vmul.f32 %v971, 1.442695
      %v978 = vpow.pop %v977
      %v979 = vmul.f32 %v972, 1.442695
      %v980 = vpow.pop %v979
      %v981 = vlaneseq
      %v982 = vshrl.u32 %v981, 7
      %v983 = vlaneseq
      %v984 = vand.u32 %v983, 127
      %vm985 = vcmp.eq.s32.totalorder %v982, %v984
      %v986 = vsel %vm985, 1.0, 0.0
      %vm987 = vcmask 64512
      %v989 = vsel %vm987, %v986, 0
      %v992 = vsel %vm987, %v299, 0
      %v995 = vsel %vm987, %v300, 0
      %v998 = vsel %vm987, %v301, 0
      %v1001 = vsel %vm987, %v302, 0
      %v1004 = vsel %vm987, %v303, 0
      %v1007 = vsel %vm987, %v304, 0
      %v1010 = vsel %vm987, %v305, 0
      %v1013 = vsel %vm987, %v306, 0
      %v1016 = vsel %vm987, %v307, 0
      %v1019 = vsel %vm987, %v308, 0
      %v1022 = vsel %vm987, %v309, 0
      %v1025 = vsel %vm987, %v310, 0
      %v1028 = vsel %vm987, %v311, 0
      %v1031 = vsel %vm987, %v312, 0
      %v1034 = vsel %vm987, %v313, 0
      %v1037 = vsel %vm987, %v314, 0
      %v1040 = vsel %vm987, %v315, 0
      %v1043 = vsel %vm987, %v316, 0
      %v1046 = vsel %vm987, %v317, 0
      %v1049 = vsel %vm987, %v318, 0
      %v1052 = vsel %vm987, %v319, 0
      %v1055 = vsel %vm987, %v320, 0
      %v1058 = vsel %vm987, %v321, 0
      %v1061 = vsel %vm987, %v322, 0
      %v1064 = vsel %vm987, %v323, 0
      %v1067 = vsel %vm987, %v324, 0
      %v1070 = vsel %vm987, %v325, 0
      %v1073 = vsel %vm987, %v326, 0
      %v1076 = vsel %vm987, %v327, 0
      %v1079 = vsel %vm987, %v328, 0
      %v1082 = vsel %vm987, %v329, 0
      %v1085 = vsel %vm987, %v330, 0
      %v1088 = vsel %vm987, %v331, 0
      %v1091 = vsel %vm987, %v332, 0
      %v1094 = vsel %vm987, %v333, 0
      %v1097 = vsel %vm987, %v334, 0
      %v1100 = vsel %vm987, %v335, 0
      %v1103 = vsel %vm987, %v336, 0
      %v1106 = vsel %vm987, %v337, 0
      %v1109 = vsel %vm987, %v338, 0
      %v1112 = vsel %vm987, %v339, 0
      %v1115 = vsel %vm987, %v340, 0
      %v1118 = vsel %vm987, %v341, 0
      %v1121 = vsel %vm987, %v342, 0
      %v1124 = vsel %vm987, %v343, 0
      %v1127 = vsel %vm987, %v344, 0
      %v1130 = vsel %vm987, %v345, 0
      %v1133 = vsel %vm987, %v346, 0
      %v1136 = vsel %vm987, %v347, 0
      %v1139 = vsel %vm987, %v348, 0
      %v1142 = vsel %vm987, %v349, 0
      %v1145 = vsel %vm987, %v350, 0
      %v1148 = vsel %vm987, %v351, 0
      %v1151 = vsel %vm987, %v352, 0
      %v1154 = vsel %vm987, %v353, 0
      %v1157 = vsel %vm987, %v354, 0
      %v1160 = vsel %vm987, %v355, 0
      %v1163 = vsel %vm987, %v356, 0
      %v1166 = vsel %vm987, %v357, 0
      %v1169 = vsel %vm987, %v358, 0
      %v1172 = vsel %vm987, %v359, 0
      %v1175 = vsel %vm987, %v360, 0
      %v1178 = vsel %vm987, %v361, 0
      %v1181 = vsel %vm987, %v362, 0
      %1183 = vmatpush.xpose.msra.mxu0 %v1037
      %1184 = vmatpush.xpose.msra.mxu0 %v1034
      %1185 = vmatpush.xpose.msra.mxu0 %v1031
      %1186 = vmatpush.xpose.msra.mxu0 %v1028
      %1187 = vmatpush.xpose.msra.mxu0 %v1025
      %1188 = vmatpush.xpose.msra.mxu0 %v1022
      %1189 = vmatpush.xpose.msra.mxu0 %v1019
      %1190 = vmatpush.xpose.msra.mxu0 %v1016
      %1191 = vmatpush.xpose.msra.mxu0 %v1013
      %1192 = vmatpush.xpose.msra.mxu0 %v1010
      %1193 = vmatpush.xpose.msra.mxu0 %v1007
      %1194 = vmatpush.xpose.msra.mxu0 %v1004
      %1195 = vmatpush.xpose.msra.mxu0 %v1001
      %1196 = vmatpush.xpose.msra.mxu0 %v998
      %1197 = vmatpush.xpose.msra.mxu0 %v995
      %1198 = vmatpush.xpose.msra.mxu0 %v992
      %1199 = vmatmul.f32.gmra.mxu0 %v989
      %v1200 = vpop.f32.mrf.mxu0
      %v1201 = vadd.f32 0.0, %v1200
      %1202 = vdwg.mxu0
      %1203 = vmatpush.xpose.msra.mxu0 %v1085
      %1204 = vmatpush.xpose.msra.mxu0 %v1082
      %1205 = vmatpush.xpose.msra.mxu0 %v1079
      %1206 = vmatpush.xpose.msra.mxu0 %v1076
      %1207 = vmatpush.xpose.msra.mxu0 %v1073
      %1208 = vmatpush.xpose.msra.mxu0 %v1070
      %1209 = vmatpush.xpose.msra.mxu0 %v1067
      %1210 = vmatpush.xpose.msra.mxu0 %v1064
      %1211 = vmatpush.xpose.msra.mxu0 %v1061
      %1212 = vmatpush.xpose.msra.mxu0 %v1058
      %1213 = vmatpush.xpose.msra.mxu0 %v1055
      %1214 = vmatpush.xpose.msra.mxu0 %v1052
      %1215 = vmatpush.xpose.msra.mxu0 %v1049
      %1216 = vmatpush.xpose.msra.mxu0 %v1046
      %1217 = vmatpush.xpose.msra.mxu0 %v1043
      %1218 = vmatpush.xpose.msra.mxu0 %v1040
      %1219 = vmatmul.f32.gmra.mxu0 %v989
      %v1220 = vpop.f32.mrf.mxu0
      %v1221 = vadd.f32 0.0, %v1220
      %1222 = vdwg.mxu0
      %1223 = vmatpush.xpose.msra.mxu0 %v1133
      %1224 = vmatpush.xpose.msra.mxu0 %v1130
      %1225 = vmatpush.xpose.msra.mxu0 %v1127
      %1226 = vmatpush.xpose.msra.mxu0 %v1124
      %1227 = vmatpush.xpose.msra.mxu0 %v1121
      %1228 = vmatpush.xpose.msra.mxu0 %v1118
      %1229 = vmatpush.xpose.msra.mxu0 %v1115
      %1230 = vmatpush.xpose.msra.mxu0 %v1112
      %1231 = vmatpush.xpose.msra.mxu0 %v1109
      %1232 = vmatpush.xpose.msra.mxu0 %v1106
      %1233 = vmatpush.xpose.msra.mxu0 %v1103
      %1234 = vmatpush.xpose.msra.mxu0 %v1100
      %1235 = vmatpush.xpose.msra.mxu0 %v1097
      %1236 = vmatpush.xpose.msra.mxu0 %v1094
      %1237 = vmatpush.xpose.msra.mxu0 %v1091
      %1238 = vmatpush.xpose.msra.mxu0 %v1088
      %1239 = vmatmul.f32.gmra.mxu0 %v989
      %v1240 = vpop.f32.mrf.mxu0
      %v1241 = vadd.f32 0.0, %v1240
      %1242 = vdwg.mxu0
      %1243 = vmatpush.xpose.msra.mxu0 %v1181
      %1244 = vmatpush.xpose.msra.mxu0 %v1178
      %1245 = vmatpush.xpose.msra.mxu0 %v1175
      %1246 = vmatpush.xpose.msra.mxu0 %v1172
      %1247 = vmatpush.xpose.msra.mxu0 %v1169
      %1248 = vmatpush.xpose.msra.mxu0 %v1166
      %1249 = vmatpush.xpose.msra.mxu0 %v1163
      %1250 = vmatpush.xpose.msra.mxu0 %v1160
      %1251 = vmatpush.xpose.msra.mxu0 %v1157
      %1252 = vmatpush.xpose.msra.mxu0 %v1154
      %1253 = vmatpush.xpose.msra.mxu0 %v1151
      %1254 = vmatpush.xpose.msra.mxu0 %v1148
      %1255 = vmatpush.xpose.msra.mxu0 %v1145
      %1256 = vmatpush.xpose.msra.mxu0 %v1142
      %1257 = vmatpush.xpose.msra.mxu0 %v1139
      %1258 = vmatpush.xpose.msra.mxu0 %v1136
      %1259 = vmatmul.f32.gmra.mxu0 %v989
      %v1260 = vpop.f32.mrf.mxu0
      %v1261 = vadd.f32 0.0, %v1260
      %1262 = vdwg.mxu0
      %v1264 = vsel %vm987, %v363, 0
      %v1267 = vsel %vm987, %v364, 0
      %v1270 = vsel %vm987, %v365, 0
      %v1273 = vsel %vm987, %v366, 0
      %v1276 = vsel %vm987, %v367, 0
      %v1279 = vsel %vm987, %v368, 0
      %v1282 = vsel %vm987, %v369, 0
      %v1285 = vsel %vm987, %v370, 0
      %v1288 = vsel %vm987, %v371, 0
      %v1291 = vsel %vm987, %v372, 0
      %v1294 = vsel %vm987, %v373, 0
      %v1297 = vsel %vm987, %v374, 0
      %v1300 = vsel %vm987, %v375, 0
      %v1303 = vsel %vm987, %v376, 0
      %v1306 = vsel %vm987, %v377, 0
      %v1309 = vsel %vm987, %v378, 0
      %v1312 = vsel %vm987, %v379, 0
      %v1315 = vsel %vm987, %v380, 0
      %v1318 = vsel %vm987, %v381, 0
      %v1321 = vsel %vm987, %v382, 0
      %v1324 = vsel %vm987, %v383, 0
      %v1327 = vsel %vm987, %v384, 0
      %v1330 = vsel %vm987, %v385, 0
      %v1333 = vsel %vm987, %v386, 0
      %v1336 = vsel %vm987, %v387, 0
      %v1339 = vsel %vm987, %v388, 0
      %v1342 = vsel %vm987, %v389, 0
      %v1345 = vsel %vm987, %v390, 0
      %v1348 = vsel %vm987, %v391, 0
      %v1351 = vsel %vm987, %v392, 0
      %v1354 = vsel %vm987, %v393, 0
      %v1357 = vsel %vm987, %v394, 0
      %v1360 = vsel %vm987, %v395, 0
      %v1363 = vsel %vm987, %v396, 0
      %v1366 = vsel %vm987, %v397, 0
      %v1369 = vsel %vm987, %v398, 0
      %v1372 = vsel %vm987, %v399, 0
      %v1375 = vsel %vm987, %v400, 0
      %v1378 = vsel %vm987, %v401, 0
      %v1381 = vsel %vm987, %v402, 0
      %v1384 = vsel %vm987, %v403, 0
      %v1387 = vsel %vm987, %v404, 0
      %v1390 = vsel %vm987, %v405, 0
      %v1393 = vsel %vm987, %v406, 0
      %v1396 = vsel %vm987, %v407, 0
      %v1399 = vsel %vm987, %v408, 0
      %v1402 = vsel %vm987, %v409, 0
      %v1405 = vsel %vm987, %v410, 0
      %v1408 = vsel %vm987, %v411, 0
      %v1411 = vsel %vm987, %v412, 0
      %v1414 = vsel %vm987, %v413, 0
      %v1417 = vsel %vm987, %v414, 0
      %v1420 = vsel %vm987, %v415, 0
      %v1423 = vsel %vm987, %v416, 0
      %v1426 = vsel %vm987, %v417, 0
      %v1429 = vsel %vm987, %v418, 0
      %v1432 = vsel %vm987, %v419, 0
      %v1435 = vsel %vm987, %v420, 0
      %v1438 = vsel %vm987, %v421, 0
      %v1441 = vsel %vm987, %v422, 0
      %v1444 = vsel %vm987, %v423, 0
      %v1447 = vsel %vm987, %v424, 0
      %v1450 = vsel %vm987, %v425, 0
      %v1453 = vsel %vm987, %v426, 0
      %1455 = vmatpush.xpose.msra.mxu0 %v1309
      %1456 = vmatpush.xpose.msra.mxu0 %v1306
      %1457 = vmatpush.xpose.msra.mxu0 %v1303
      %1458 = vmatpush.xpose.msra.mxu0 %v1300
      %1459 = vmatpush.xpose.msra.mxu0 %v1297
      %1460 = vmatpush.xpose.msra.mxu0 %v1294
      %1461 = vmatpush.xpose.msra.mxu0 %v1291
      %1462 = vmatpush.xpose.msra.mxu0 %v1288
      %1463 = vmatpush.xpose.msra.mxu0 %v1285
      %1464 = vmatpush.xpose.msra.mxu0 %v1282
      %1465 = vmatpush.xpose.msra.mxu0 %v1279
      %1466 = vmatpush.xpose.msra.mxu0 %v1276
      %1467 = vmatpush.xpose.msra.mxu0 %v1273
      %1468 = vmatpush.xpose.msra.mxu0 %v1270
      %1469 = vmatpush.xpose.msra.mxu0 %v1267
      %1470 = vmatpush.xpose.msra.mxu0 %v1264
      %1471 = vmatmul.f32.gmra.mxu0 %v989
      %v1472 = vpop.f32.mrf.mxu0
      %v1473 = vadd.f32 0.0, %v1472
      %1474 = vdwg.mxu0
      %1475 = vmatpush.xpose.msra.mxu0 %v1357
      %1476 = vmatpush.xpose.msra.mxu0 %v1354
      %1477 = vmatpush.xpose.msra.mxu0 %v1351
      %1478 = vmatpush.xpose.msra.mxu0 %v1348
      %1479 = vmatpush.xpose.msra.mxu0 %v1345
      %1480 = vmatpush.xpose.msra.mxu0 %v1342
      %1481 = vmatpush.xpose.msra.mxu0 %v1339
      %1482 = vmatpush.xpose.msra.mxu0 %v1336
      %1483 = vmatpush.xpose.msra.mxu0 %v1333
      %1484 = vmatpush.xpose.msra.mxu0 %v1330
      %1485 = vmatpush.xpose.msra.mxu0 %v1327
      %1486 = vmatpush.xpose.msra.mxu0 %v1324
      %1487 = vmatpush.xpose.msra.mxu0 %v1321
      %1488 = vmatpush.xpose.msra.mxu0 %v1318
      %1489 = vmatpush.xpose.msra.mxu0 %v1315
      %1490 = vmatpush.xpose.msra.mxu0 %v1312
      %1491 = vmatmul.f32.gmra.mxu0 %v989
      %v1492 = vpop.f32.mrf.mxu0
      %v1493 = vadd.f32 0.0, %v1492
      %1494 = vdwg.mxu0
      %1495 = vmatpush.xpose.msra.mxu0 %v1405
      %1496 = vmatpush.xpose.msra.mxu0 %v1402
      %1497 = vmatpush.xpose.msra.mxu0 %v1399
      %1498 = vmatpush.xpose.msra.mxu0 %v1396
      %1499 = vmatpush.xpose.msra.mxu0 %v1393
      %1500 = vmatpush.xpose.msra.mxu0 %v1390
      %1501 = vmatpush.xpose.msra.mxu0 %v1387
      %1502 = vmatpush.xpose.msra.mxu0 %v1384
      %1503 = vmatpush.xpose.msra.mxu0 %v1381
      %1504 = vmatpush.xpose.msra.mxu0 %v1378
      %1505 = vmatpush.xpose.msra.mxu0 %v1375
      %1506 = vmatpush.xpose.msra.mxu0 %v1372
      %1507 = vmatpush.xpose.msra.mxu0 %v1369
      %1508 = vmatpush.xpose.msra.mxu0 %v1366
      %1509 = vmatpush.xpose.msra.mxu0 %v1363
      %1510 = vmatpush.xpose.msra.mxu0 %v1360
      %1511 = vmatmul.f32.gmra.mxu0 %v989
      %v1512 = vpop.f32.mrf.mxu0
      %v1513 = vadd.f32 0.0, %v1512
      %1514 = vdwg.mxu0
      %1515 = vmatpush.xpose.msra.mxu0 %v1453
      %1516 = vmatpush.xpose.msra.mxu0 %v1450
      %1517 = vmatpush.xpose.msra.mxu0 %v1447
      %1518 = vmatpush.xpose.msra.mxu0 %v1444
      %1519 = vmatpush.xpose.msra.mxu0 %v1441
      %1520 = vmatpush.xpose.msra.mxu0 %v1438
      %1521 = vmatpush.xpose.msra.mxu0 %v1435
      %1522 = vmatpush.xpose.msra.mxu0 %v1432
      %1523 = vmatpush.xpose.msra.mxu0 %v1429
      %1524 = vmatpush.xpose.msra.mxu0 %v1426
      %1525 = vmatpush.xpose.msra.mxu0 %v1423
      %1526 = vmatpush.xpose.msra.mxu0 %v1420
      %1527 = vmatpush.xpose.msra.mxu0 %v1417
      %1528 = vmatpush.xpose.msra.mxu0 %v1414
      %1529 = vmatpush.xpose.msra.mxu0 %v1411
      %1530 = vmatpush.xpose.msra.mxu0 %v1408
      %1531 = vmatmul.f32.gmra.mxu0 %v989
      %v1532 = vpop.f32.mrf.mxu0
      %v1533 = vadd.f32 0.0, %v1532
      %1534 = vdwg.mxu0
      %v1535 = vsub.f32 %v1201, %v895
      %v1536 = vsub.f32 %v1221, %v918
      %v1537 = vsub.f32 %v1241, %v941
      %v1538 = vsub.f32 %v1261, %v964
      %v1539 = vmul.f32 %v1535, %v974
      %v1540 = vmul.f32 %v1536, %v976
      %v1541 = vmul.f32 %v1537, %v978
      %v1542 = vmul.f32 %v1538, %v980
      %v1543 = vmul.f32 %v1539, -0.5
      %v1544 = vmul.f32 %v1540, -0.5
      %v1545 = vmul.f32 %v1541, -0.5
      %v1546 = vmul.f32 %v1542, -0.5
      %v1547 = vmul.f32 %v1543, %v1539
      %v1548 = vmul.f32 %v1544, %v1540
      %v1549 = vmul.f32 %v1545, %v1541
      %v1550 = vmul.f32 %v1546, %v1542
      %v1551 = vsub.f32 %v1547, %v898
      %v1552 = vsub.f32 %v1548, %v921
      %v1553 = vsub.f32 %v1549, %v944
      %v1554 = vsub.f32 %v1550, %v967
      %v1555 = vrot.slane %v1551, 4
      %v1556 = vadd.f32 %v1551, %v1555
      %v1557 = vrot.slane %v1556, 2
      %v1558 = vadd.f32 %v1556, %v1557
      %v1559 = vrot.slane %v1558, 1
      %v1560 = vadd.f32 %v1558, %v1559
      %v1561 = vrot.slane %v1552, 4
      %v1562 = vadd.f32 %v1552, %v1561
      %v1563 = vrot.slane %v1562, 2
      %v1564 = vadd.f32 %v1562, %v1563
      %v1565 = vrot.slane %v1564, 1
      %v1566 = vadd.f32 %v1564, %v1565
      %v1567 = vrot.slane %v1553, 4
      %v1568 = vadd.f32 %v1553, %v1567
      %v1569 = vrot.slane %v1568, 2
      %v1570 = vadd.f32 %v1568, %v1569
      %v1571 = vrot.slane %v1570, 1
      %v1572 = vadd.f32 %v1570, %v1571
      %v1573 = vrot.slane %v1554, 4
      %v1574 = vadd.f32 %v1554, %v1573
      %v1575 = vrot.slane %v1574, 2
      %v1576 = vadd.f32 %v1574, %v1575
      %v1577 = vrot.slane %v1576, 1
      %v1578 = vadd.f32 %v1576, %v1577
      %v1579 = vmul.f32 %v1201, %v1201
      %v1580 = vmul.f32 %v1221, %v1221
      %v1581 = vmul.f32 %v1241, %v1241
      %v1582 = vmul.f32 %v1261, %v1261
      %v1583 = vrot.slane %v1579, 4
      %v1584 = vadd.f32 %v1579, %v1583
      %v1585 = vrot.slane %v1584, 2
      %v1586 = vadd.f32 %v1584, %v1585
      %v1587 = vrot.slane %v1586, 1
      %v1588 = vadd.f32 %v1586, %v1587
      %v1589 = vrot.slane %v1580, 4
      %v1590 = vadd.f32 %v1580, %v1589
      %v1591 = vrot.slane %v1590, 2
      %v1592 = vadd.f32 %v1590, %v1591
      %v1593 = vrot.slane %v1592, 1
      %v1594 = vadd.f32 %v1592, %v1593
      %v1595 = vrot.slane %v1581, 4
      %v1596 = vadd.f32 %v1581, %v1595
      %v1597 = vrot.slane %v1596, 2
      %v1598 = vadd.f32 %v1596, %v1597
      %v1599 = vrot.slane %v1598, 1
      %v1600 = vadd.f32 %v1598, %v1599
      %v1601 = vrot.slane %v1582, 4
      %v1602 = vadd.f32 %v1582, %v1601
      %v1603 = vrot.slane %v1602, 2
      %v1604 = vadd.f32 %v1602, %v1603
      %v1605 = vrot.slane %v1604, 1
      %v1606 = vadd.f32 %v1604, %v1605
      %v1607 = vsub.f32 %v1560, 7.351508
      %v1608 = vsub.f32 %v1566, 7.351508
      %v1609 = vsub.f32 %v1572, 7.351508
      %v1610 = vsub.f32 %v1578, 7.351508
      %v1611 = vmul.f32 %v1588, 0.5
      %v1612 = vmul.f32 %v1594, 0.5
      %v1613 = vmul.f32 %v1600, 0.5
      %v1614 = vmul.f32 %v1606, 0.5
      %v1615 = vadd.f32 %v1560, %v1611
      %v1616 = vadd.f32 %v1566, %v1612
      %v1617 = vadd.f32 %v1572, %v1613
      %v1618 = vadd.f32 %v1578, %v1614
      %v1619 = vsub.f32 %v1473, %v895
      %v1620 = vsub.f32 %v1493, %v918
      %v1621 = vsub.f32 %v1513, %v941
      %v1622 = vsub.f32 %v1533, %v964
      %v1623 = vmul.f32 %v1619, %v974
      %v1624 = vmul.f32 %v1620, %v976
      %v1625 = vmul.f32 %v1621, %v978
      %v1626 = vmul.f32 %v1622, %v980
      %v1627 = vmul.f32 %v1623, -0.5
      %v1628 = vmul.f32 %v1624, -0.5
      %v1629 = vmul.f32 %v1625, -0.5
      %v1630 = vmul.f32 %v1626, -0.5
      %v1631 = vmul.f32 %v1627, %v1623
      %v1632 = vmul.f32 %v1628, %v1624
      %v1633 = vmul.f32 %v1629, %v1625
      %v1634 = vmul.f32 %v1630, %v1626
      %v1635 = vsub.f32 %v1631, %v898
      %v1636 = vsub.f32 %v1632, %v921
      %v1637 = vsub.f32 %v1633, %v944
      %v1638 = vsub.f32 %v1634, %v967
      %v1639 = vrot.slane %v1635, 4
      %v1640 = vadd.f32 %v1635, %v1639
      %v1641 = vrot.slane %v1640, 2
      %v1642 = vadd.f32 %v1640, %v1641
      %v1643 = vrot.slane %v1642, 1
      %v1644 = vadd.f32 %v1642, %v1643
      %v1645 = vrot.slane %v1636, 4
      %v1646 = vadd.f32 %v1636, %v1645
      %v1647 = vrot.slane %v1646, 2
      %v1648 = vadd.f32 %v1646, %v1647
      %v1649 = vrot.slane %v1648, 1
      %v1650 = vadd.f32 %v1648, %v1649
      %v1651 = vrot.slane %v1637, 4
      %v1652 = vadd.f32 %v1637, %v1651
      %v1653 = vrot.slane %v1652, 2
      %v1654 = vadd.f32 %v1652, %v1653
      %v1655 = vrot.slane %v1654, 1
      %v1656 = vadd.f32 %v1654, %v1655
      %v1657 = vrot.slane %v1638, 4
      %v1658 = vadd.f32 %v1638, %v1657
      %v1659 = vrot.slane %v1658, 2
      %v1660 = vadd.f32 %v1658, %v1659
      %v1661 = vrot.slane %v1660, 1
      %v1662 = vadd.f32 %v1660, %v1661
      %v1663 = vmul.f32 %v1473, %v1473
      %v1664 = vmul.f32 %v1493, %v1493
      %v1665 = vmul.f32 %v1513, %v1513
      %v1666 = vmul.f32 %v1533, %v1533
      %v1667 = vrot.slane %v1663, 4
      %v1668 = vadd.f32 %v1663, %v1667
      %v1669 = vrot.slane %v1668, 2
      %v1670 = vadd.f32 %v1668, %v1669
      %v1671 = vrot.slane %v1670, 1
      %v1672 = vadd.f32 %v1670, %v1671
      %v1673 = vrot.slane %v1664, 4
      %v1674 = vadd.f32 %v1664, %v1673
      %v1675 = vrot.slane %v1674, 2
      %v1676 = vadd.f32 %v1674, %v1675
      %v1677 = vrot.slane %v1676, 1
      %v1678 = vadd.f32 %v1676, %v1677
      %v1679 = vrot.slane %v1665, 4
      %v1680 = vadd.f32 %v1665, %v1679
      %v1681 = vrot.slane %v1680, 2
      %v1682 = vadd.f32 %v1680, %v1681
      %v1683 = vrot.slane %v1682, 1
      %v1684 = vadd.f32 %v1682, %v1683
      %v1685 = vrot.slane %v1666, 4
      %v1686 = vadd.f32 %v1666, %v1685
      %v1687 = vrot.slane %v1686, 2
      %v1688 = vadd.f32 %v1686, %v1687
      %v1689 = vrot.slane %v1688, 1
      %v1690 = vadd.f32 %v1688, %v1689
      %v1691 = vmul.f32 %v1672, 0.5
      %v1692 = vmul.f32 %v1678, 0.5
      %v1693 = vmul.f32 %v1684, 0.5
      %v1694 = vmul.f32 %v1690, 0.5
      %v1695 = vadd.f32 %v1644, %v1691
      %v1696 = vadd.f32 %v1650, %v1692
      %v1697 = vadd.f32 %v1656, %v1693
      %v1698 = vadd.f32 %v1662, %v1694
      %v1703 = vrot.slane %v1608, 7
      %v1704 = vrot.slane %v1609, 6
      %v1705 = vrot.slane %v1610, 5
      %vm1706 = vcmask 1040384
      %v1707 = vsel %vm1706, %v1607, %v1703
      %vm1708 = vcmask 1042434
      %v1709 = vsel %vm1708, %v1704, %v1705
      %vm1710 = vcmask 1041408
      %v1711 = vsel %vm1710, %v1707, %v1709
      %v1713 = vlaneseq
      %vm1714 = vcmp.ge.s32.totalorder %v1713, 0
      %vm1715 = vcmp.lt.s32.totalorder %v1713, 512
      %vm1716 = vmand %vm1714, %vm1715
      %1717 = vst.msk [vmem:[%s297] ss:$2 sm:$0xf] %vm1716, %v1711
      %v1718 = vxor.u32 %v1615, 2147483648
      %v1719 = vxor.u32 %v1616, 2147483648
      %v1720 = vxor.u32 %v1617, 2147483648
      %v1721 = vxor.u32 %v1618, 2147483648
      %v1722 = vmul.f32 %v1718, 1.442695
      %v1723 = vpow.pop %v1722
      %v1724 = vmul.f32 %v1719, 1.442695
      %v1725 = vpow.pop %v1724
      %v1726 = vmul.f32 %v1720, 1.442695
      %v1727 = vpow.pop %v1726
      %v1728 = vmul.f32 %v1721, 1.442695
      %v1729 = vpow.pop %v1728
      %v1730 = vadd.f32 %v1723, 1.0
      %v1731 = vadd.f32 %v1725, 1.0
      %v1732 = vadd.f32 %v1727, 1.0
      %v1733 = vadd.f32 %v1729, 1.0
      %v1734 = vrcp.pop %v1730
      %v1735 = vmul.f32 %v1730, %v1734
      %v1736 = vsub.f32 1.0, %v1735
      %v1737 = vmul.f32 %v1734, %v1736
      %v1738 = vadd.f32 %v1734, %v1737
      %vm1739 = vweird.f32 %v1730
      %vm1740 = vweird.f32 %v1734
      %vm1741 = vmor %vm1739, %vm1740
      %v1742 = vsel %vm1741, %v1734, %v1738
      %v1743 = vand.u32 2147483647, %v1730
      %vm1744 = vcmp.eq.f32.partialorder %v1743, 8.507059e+37
      %v1745 = vand.u32 %v1730, 2147483648
      %v1746 = vor.u32 1.1754944e-38, %v1745
      %v1747 = vsel %vm1744, %v1746, %v1742
      %v1748 = vmul.f32 1.0, %v1747
      %v1749 = vrcp.pop %v1731
      %v1750 = vmul.f32 %v1731, %v1749
      %v1751 = vsub.f32 1.0, %v1750
      %v1752 = vmul.f32 %v1749, %v1751
      %v1753 = vadd.f32 %v1749, %v1752
      %vm1754 = vweird.f32 %v1731
      %vm1755 = vweird.f32 %v1749
      %vm1756 = vmor %vm1754, %vm1755
      %v1757 = vsel %vm1756, %v1749, %v1753
      %v1758 = vand.u32 2147483647, %v1731
      %vm1759 = vcmp.eq.f32.partialorder %v1758, 8.507059e+37
      %v1760 = vand.u32 %v1731, 2147483648
      %v1761 = vor.u32 1.1754944e-38, %v1760
      %v1762 = vsel %vm1759, %v1761, %v1757
      %v1763 = vmul.f32 1.0, %v1762
      %v1764 = vrcp.pop %v1732
      %v1765 = vmul.f32 %v1732, %v1764
      %v1766 = vsub.f32 1.0, %v1765
      %v1767 = vmul.f32 %v1764, %v1766
      %v1768 = vadd.f32 %v1764, %v1767
      %vm1769 = vweird.f32 %v1732
      %vm1770 = vweird.f32 %v1764
      %vm1771 = vmor %vm1769, %vm1770
      %v1772 = vsel %vm1771, %v1764, %v1768
      %v1773 = vand.u32 2147483647, %v1732
      %vm1774 = vcmp.eq.f32.partialorder %v1773, 8.507059e+37
      %v1775 = vand.u32 %v1732, 2147483648
      %v1776 = vor.u32 1.1754944e-38, %v1775
      %v1777 = vsel %vm1774, %v1776, %v1772
      %v1778 = vmul.f32 1.0, %v1777
      %v1779 = vrcp.pop %v1733
      %v1780 = vmul.f32 %v1733, %v1779
      %v1781 = vsub.f32 1.0, %v1780
      %v1782 = vmul.f32 %v1779, %v1781
      %v1783 = vadd.f32 %v1779, %v1782
      %vm1784 = vweird.f32 %v1733
      %vm1785 = vweird.f32 %v1779
      %vm1786 = vmor %vm1784, %vm1785
      %v1787 = vsel %vm1786, %v1779, %v1783
      %v1788 = vand.u32 2147483647, %v1733
      %vm1789 = vcmp.eq.f32.partialorder %v1788, 8.507059e+37
      %v1790 = vand.u32 %v1733, 2147483648
      %v1791 = vor.u32 1.1754944e-38, %v1790
      %v1792 = vsel %vm1789, %v1791, %v1787
      %v1793 = vmul.f32 1.0, %v1792
      %v1794 = vxor.u32 %v1695, 2147483648
      %v1795 = vxor.u32 %v1696, 2147483648
      %v1796 = vxor.u32 %v1697, 2147483648
      %v1797 = vxor.u32 %v1698, 2147483648
      %v1798 = vmul.f32 %v1794, 1.442695
      %v1799 = vpow.pop %v1798
      %v1800 = vmul.f32 %v1795, 1.442695
      %v1801 = vpow.pop %v1800
      %v1802 = vmul.f32 %v1796, 1.442695
      %v1803 = vpow.pop %v1802
      %v1804 = vmul.f32 %v1797, 1.442695
      %v1805 = vpow.pop %v1804
      %v1806 = vadd.f32 %v1799, 1.0
      %v1807 = vadd.f32 %v1801, 1.0
      %v1808 = vadd.f32 %v1803, 1.0
      %v1809 = vadd.f32 %v1805, 1.0
      %v1810 = vrcp.pop %v1806
      %v1811 = vmul.f32 %v1806, %v1810
      %v1812 = vsub.f32 1.0, %v1811
      %v1813 = vmul.f32 %v1810, %v1812
      %v1814 = vadd.f32 %v1810, %v1813
      %vm1815 = vweird.f32 %v1806
      %vm1816 = vweird.f32 %v1810
      %vm1817 = vmor %vm1815, %vm1816
      %v1818 = vsel %vm1817, %v1810, %v1814
      %v1819 = vand.u32 2147483647, %v1806
      %vm1820 = vcmp.eq.f32.partialorder %v1819, 8.507059e+37
      %v1821 = vand.u32 %v1806, 2147483648
      %v1822 = vor.u32 1.1754944e-38, %v1821
      %v1823 = vsel %vm1820, %v1822, %v1818
      %v1824 = vmul.f32 1.0, %v1823
      %v1825 = vrcp.pop %v1807
      %v1826 = vmul.f32 %v1807, %v1825
      %v1827 = vsub.f32 1.0, %v1826
      %v1828 = vmul.f32 %v1825, %v1827
      %v1829 = vadd.f32 %v1825, %v1828
      %vm1830 = vweird.f32 %v1807
      %vm1831 = vweird.f32 %v1825
      %vm1832 = vmor %vm1830, %vm1831
      %v1833 = vsel %vm1832, %v1825, %v1829
      %v1834 = vand.u32 2147483647, %v1807
      %vm1835 = vcmp.eq.f32.partialorder %v1834, 8.507059e+37
      %v1836 = vand.u32 %v1807, 2147483648
      %v1837 = vor.u32 1.1754944e-38, %v1836
      %v1838 = vsel %vm1835, %v1837, %v1833
      %v1839 = vmul.f32 1.0, %v1838
      %v1840 = vrcp.pop %v1808
      %v1841 = vmul.f32 %v1808, %v1840
      %v1842 = vsub.f32 1.0, %v1841
      %v1843 = vmul.f32 %v1840, %v1842
      %v1844 = vadd.f32 %v1840, %v1843
      %vm1845 = vweird.f32 %v1808
      %vm1846 = vweird.f32 %v1840
      %vm1847 = vmor %vm1845, %vm1846
      %v1848 = vsel %vm1847, %v1840, %v1844
      %v1849 = vand.u32 2147483647, %v1808
      %vm1850 = vcmp.eq.f32.partialorder %v1849, 8.507059e+37
      %v1851 = vand.u32 %v1808, 2147483648
      %v1852 = vor.u32 1.1754944e-38, %v1851
      %v1853 = vsel %vm1850, %v1852, %v1848
      %v1854 = vmul.f32 1.0, %v1853
      %v1855 = vrcp.pop %v1809
      %v1856 = vmul.f32 %v1809, %v1855
      %v1857 = vsub.f32 1.0, %v1856
      %v1858 = vmul.f32 %v1855, %v1857
      %v1859 = vadd.f32 %v1855, %v1858
      %vm1860 = vweird.f32 %v1809
      %vm1861 = vweird.f32 %v1855
      %vm1862 = vmor %vm1860, %vm1861
      %v1863 = vsel %vm1862, %v1855, %v1859
      %v1864 = vand.u32 2147483647, %v1809
      %vm1865 = vcmp.eq.f32.partialorder %v1864, 8.507059e+37
      %v1866 = vand.u32 %v1809, 2147483648
      %v1867 = vor.u32 1.1754944e-38, %v1866
      %v1868 = vsel %vm1865, %v1867, %v1863
      %v1869 = vmul.f32 1.0, %v1868
      %v1870 = vadd.f32 %v1748, %v1824
      %v1871 = vadd.f32 %v1763, %v1839
      %v1872 = vadd.f32 %v1778, %v1854
      %v1873 = vadd.f32 %v1793, %v1869
      %v1874 = vsub.f32 %v1870, 1.0
      %v1875 = vsub.f32 %v1871, 1.0
      %v1876 = vsub.f32 %v1872, 1.0
      %v1877 = vsub.f32 %v1873, 1.0
      %v1882 = vrot.slane %v1875, 7
      %v1883 = vrot.slane %v1876, 6
      %v1884 = vrot.slane %v1877, 5
      %v1885 = vsel %vm1706, %v1874, %v1882
      %v1886 = vsel %vm1708, %v1883, %v1884
      %v1887 = vsel %vm1710, %v1885, %v1886
      %s1889 = scalar_lea.vmem %s297, 1
      %1890 = vst.msk [vmem:[%s1889] ss:$2 sm:$0xf] %vm1716, %v1887
      %s1891 = smul.u32 4, %s17
      %p1892 = scmp.lt.s32.totalorder %s1891, 7
      %s1893 = scalar_select %p1892, %s1891, 7
      %s1894 = smul.addr %s1893, 2
      %s1895 = scalar_lea.vmem %s6, %s1894
      // Predicated region
      $region45: #{bnpe_loss.1} parent=43 // pred_check
        %p1896 = pneg %p176
      $region46: #{bnpe_loss.1} parent=43 // pred_check_branch
        %1898 = sbr.rel (%p1896) target = $region48
      $region47: #{bnpe_loss.1} parent=43 // pred_region
        %s1899 = smul.u32 4, %s17
      $region48: #{bnpe_loss.1} parent=43 // pred_fallthru
        _
    $region44: #{bnpe_loss.1} parent=5 // pred_fallthru
      _
    %p1900 = scmp.le.s32.totalorder 2, %s12
    // Predicated region
    $region49: #{bnpe_loss.1} parent=5 // pred_check
      %p1901 = pneg %p1900
    $region50: #{bnpe_loss.1} parent=5 // pred_check_branch
      %1903 = sbr.rel (%p1901) target = $region52
    $region51: #{bnpe_loss.1} parent=5 // pred_region
      %s1904 = ssub.s32 %s12, 2
      // Predicated region
      $region53: #{bnpe_loss.1} parent=51 // pred_check
        %p1905 = pneg %p182
      $region54: #{bnpe_loss.1} parent=51 // pred_check_branch
        %1907 = sbr.rel (%p1905) target = $region56
      $region55: #{bnpe_loss.1} parent=51 // pred_region
        %s1908 = smul.u32 4, %s18
        %p1909 = scmp.lt.s32.totalorder %s1908, 7
        %s1910 = scalar_select %p1909, %s1908, 7
        %s1911 = smul.addr %s1910, 2
        %s1912 = scalar_lea.vmem %s6, %s1911
      $region56: #{bnpe_loss.1} parent=51 // pred_fallthru
        _
    $region52: #{bnpe_loss.1} parent=5 // pred_fallthru
      _
  $region6: #{bnpe_loss.1} parent=0 // loop_footer
    %s16 = sadd.s32 1, %s12
  $region7: #{bnpe_loss.1} parent=0 // loop_footer_branch
    %11 = sbr.rel target = $region3
  $region8: #{bnpe_loss.1} parent=0 // loop_exit
    _

</llo_original>
